<compile_context>
chip_gen: v7x
topology: tpu7x:2x2x1
jax: 0.10.0
libtpu: 0.0.40
codegen_flags: <defaults>
</compile_context>

<pallas_src>
import functools

import jax
import jax.numpy as jnp
from jax import lax
from jax.experimental import pallas as pl
from jax.experimental.pallas import tpu as pltpu

N_EMBD = 192          # fixed by the module
NUM_HEADS = 6
HEAD_SIZE = N_EMBD // NUM_HEADS   # 32


def _mha_kernel(x_ref, wqkv_ref, wp_ref, bp_ref, o_ref, qkv_ref, cat_ref,
                *, num_heads, head_size):
    # x_ref:    (Bb, T, C)       block of batch elements (f32)
    # wqkv_ref: (C, 3*H*hs)      bf16, columns [Wq_all*scale | Wk_all | Wv_all]
    # wp_ref:   (C, C)           bf16
    # bp_ref:   (1, C)           f32
    # o_ref:    (Bb, T, C)
    # qkv_ref:  (Bb, T, 3*H*hs)  bf16 VMEM scratch (fused QKV result)
    # cat_ref:  (Bb, T, C)       bf16 VMEM scratch (per-head output concat)
    Bb, T, C = x_ref.shape
    hd = num_heads * head_size          # == C for this module

    # One fused QKV projection: bf16 MXU operands, f32 accumulation.
    x_b = x_ref[...].astype(jnp.bfloat16)
    qkv = lax.dot_general(x_b, wqkv_ref[...], (((2,), (0,)), ((), ())),
                          preferred_element_type=jnp.float32)   # (Bb, T, 3*hd)
    qkv_ref[...] = qkv.astype(jnp.bfloat16)

    # Additive causal bias, (1, T, T), broadcast over the batch dim.
    # -1e30 is safe: the diagonal keeps every row partially unmasked, so
    # exp(-1e30 - m) underflows to 0 without producing NaN.
    row = lax.broadcasted_iota(jnp.int32, (1, T, T), 1)
    col = lax.broadcasted_iota(jnp.int32, (1, T, T), 2)
    causal_bias = jnp.where(col <= row, 0.0, -1e30).astype(jnp.float32)

    for h in range(num_heads):          # static unroll over heads
        qo = h * head_size
        ko = hd + qo
        vo = 2 * hd + qo
        q = qkv_ref[:, :, qo:qo + head_size]   # (Bb, T, hs) bf16; scale folded in
        k = qkv_ref[:, :, ko:ko + head_size]
        v = qkv_ref[:, :, vo:vo + head_size]

        # Scores: contract last dims, batch over Bb -- no explicit transpose.
        s = lax.dot_general(q, k, (((2,), (2,)), ((0,), (0,))),
                            preferred_element_type=jnp.float32)   # (Bb, T, T)
        s = s + causal_bias

        # Softmax in f32 (EUP handles exp + approximate reciprocal).
        m = jnp.max(s, axis=-1, keepdims=True)
        e = jnp.exp(s - m)
        p = e * pl.reciprocal(jnp.sum(e, axis=-1, keepdims=True), approx=True)

        out_h = lax.dot_general(p.astype(jnp.bfloat16), v,
                                (((2,), (1,)), ((0,), (0,))),
                                preferred_element_type=jnp.float32)  # (Bb,T,hs)

        # Write this head's output into its concat slice (no accumulator RMW).
        cat_ref[:, :, qo:qo + head_size] = out_h.astype(jnp.bfloat16)

    # ONE wide output projection (K = C = 192) + bias, after the head loop.
    proj = lax.dot_general(cat_ref[...], wp_ref[...], (((2,), (0,)), ((), ())),
                           preferred_element_type=jnp.float32)       # (Bb, T, C)
    o_ref[...] = (proj + bp_ref[...].astype(jnp.float32)).astype(o_ref.dtype)


def _pick_block_b(B, T, target_rows=1024, min_grid=2):
    """Pick block_b (divisor of B) with block_b*T <= target_rows, preferring to
    keep the grid length >= min_grid so both v7x TensorCores get work."""
    divisors = [d for d in range(1, B + 1) if B % d == 0]
    fitting = [d for d in divisors if d * T <= target_rows]
    if not fitting:
        return 1
    multi = [d for d in fitting if B // d >= min_grid]
    return max(multi) if multi else max(fitting)


def multi_head_attention(x, wq, wk, wv, wp, bp, *, block_b=None):
    """x: (B, T, C) f32.  wq/wk/wv: (H, C, hs).  wp: (C, C).  bp: (1, C)."""
    B, T, C = x.shape
    H, _, hs = wq.shape
    scale = float(C) ** -0.5   # matches the reference module: n_embd**-0.5

    if block_b is None:
        block_b = _pick_block_b(B, T)
    assert B % block_b == 0

    # Fuse per-head Q/K/V weights into one (C, 3*H*hs) matrix so the kernel
    # runs a single wide QKV matmul; fold the softmax scale into the q columns.
    wq_all = jnp.transpose(wq, (1, 0, 2)).reshape(C, H * hs) * scale
    wk_all = jnp.transpose(wk, (1, 0, 2)).reshape(C, H * hs)
    wv_all = jnp.transpose(wv, (1, 0, 2)).reshape(C, H * hs)
    wqkv = jnp.concatenate([wq_all, wk_all, wv_all], axis=-1).astype(jnp.bfloat16)
    wp_b = wp.astype(jnp.bfloat16)
    bp_f = bp.astype(jnp.float32)

    kernel = functools.partial(_mha_kernel, num_heads=H, head_size=hs)
    full2 = lambda *_: (0, 0)

    return pl.pallas_call(
        kernel,
        out_shape=jax.ShapeDtypeStruct((B, T, C), x.dtype),
        grid_spec=pltpu.PrefetchScalarGridSpec(
            num_scalar_prefetch=0,
            grid=(B // block_b,),
            in_specs=[
                pl.BlockSpec((block_b, T, C), lambda b: (b, 0, 0)),   # x
                pl.BlockSpec((C, 3 * H * hs), full2),                 # Wqkv (bf16)
                pl.BlockSpec((C, C), full2),                          # Wproj (bf16)
                pl.BlockSpec((1, C), full2),                          # bproj
            ],
            out_specs=pl.BlockSpec((block_b, T, C), lambda b: (b, 0, 0)),
            scratch_shapes=[
                pltpu.VMEM((block_b, T, 3 * H * hs), jnp.bfloat16),   # fused QKV
                pltpu.VMEM((block_b, T, C), jnp.bfloat16),            # head concat
            ],
        ),
        compiler_params=pltpu.CompilerParams(
            dimension_semantics=("parallel",)),
    )(x, wqkv, wp_b, bp_f)


def _reference(x, wq, wk, wv, wp, bp):
    B, T, C = x.shape
    scale = C ** -0.5
    mask = jnp.tril(jnp.ones((T, T), dtype=bool))
    outs = []
    for h in range(wq.shape[0]):
        q = x @ wq[h]
        k = x @ wk[h]
        v = x @ wv[h]
        s = jnp.einsum("btd,bsd->bts", q, k) * scale
        s = jnp.where(mask[None], s, -jnp.inf)
        p = jax.nn.softmax(s, axis=-1)
        outs.append(jnp.einsum("bts,bsd->btd", p, v))
    cat = jnp.concatenate(outs, axis=-1)
    return cat @ wp + bp


if __name__ == "__main__":
    B, T = 4, 8   # small seq length (<= block_size=128)
    key = jax.random.PRNGKey(0)
    kx, kq, kk, kv, kp, kb = jax.random.split(key, 6)

    x = jax.random.normal(kx, (B, T, N_EMBD), dtype=jnp.float32)

    # Deterministic synthetic parameters (already in (in, out) orientation).
    wq = jax.random.normal(kq, (NUM_HEADS, N_EMBD, HEAD_SIZE), jnp.float32) * 0.02
    wk = jax.random.normal(kk, (NUM_HEADS, N_EMBD, HEAD_SIZE), jnp.float32) * 0.02
    wv = jax.random.normal(kv, (NUM_HEADS, N_EMBD, HEAD_SIZE), jnp.float32) * 0.02
    wp = jax.random.normal(kp, (N_EMBD, N_EMBD), jnp.float32) * 0.02
    bp = jax.random.normal(kb, (1, N_EMBD), jnp.float32) * 0.02

    out = multi_head_attention(x, wq, wk, wv, wp, bp)
    out = jax.block_until_ready(out)

    ref = _reference(x, wq, wk, wv, wp, bp)
    assert out.shape == (B, T, N_EMBD)
    # bf16 MXU operands + approx reciprocal -> relax tolerance to ~1e-2.
    assert jnp.allclose(out, ref, atol=1e-2, rtol=1e-2), "mismatch vs reference"

    print("KERNEL_OK")
</pallas_src>

<mosaic_0001>
module attributes {stable_mosaic.version = 11 : i64} {
  func.func @_mha_kernel(%arg0: i32, %arg1: memref<2x8x192xf32, #tpu.memory_space<vmem>>, %arg2: memref<192x576xbf16, #tpu.memory_space<vmem>>, %arg3: memref<192x192xbf16, #tpu.memory_space<vmem>>, %arg4: memref<1x192xf32, #tpu.memory_space<vmem>>, %arg5: memref<2x8x192xf32, #tpu.memory_space<vmem>>, %arg6: memref<2x8x576xbf16, #tpu.memory_space<vmem>>, %arg7: memref<2x8x192xbf16, #tpu.memory_space<vmem>>) attributes {dimension_semantics = [#tpu.dimension_semantics<parallel>], iteration_bounds = array<i64: 2>, scalar_prefetch = 0 : i64, scratch_operands = 2 : i64, tpu.core_type = #tpu.core_type<tc>, window_params = [{transform_indices = @transform_0, window_bounds = array<i64: 2, 8, 192>}, {pipeline_mode = #tpu.pipeline_mode<synchronous>, transform_indices = @transform_1, window_bounds = array<i64: 192, 576>}, {pipeline_mode = #tpu.pipeline_mode<synchronous>, transform_indices = @transform_2, window_bounds = array<i64: 192, 192>}, {pipeline_mode = #tpu.pipeline_mode<synchronous>, transform_indices = @transform_3, window_bounds = array<i64: 1, 192>}, {transform_indices = @transform_4, window_bounds = array<i64: 2, 8, 192>}]} {
    %c0 = arith.constant 0 : index
    %c0_0 = arith.constant 0 : index
    %c0_1 = arith.constant 0 : index
    %0 = vector.load %arg1[%c0, %c0_0, %c0_1] : memref<2x8x192xf32, #tpu.memory_space<vmem>>, vector<2x8x192xf32>
    %1 = arith.truncf %0 : vector<2x8x192xf32> to vector<2x8x192xbf16>
    %c0_2 = arith.constant 0 : index
    %c0_3 = arith.constant 0 : index
    %2 = vector.load %arg2[%c0_2, %c0_3] : memref<192x576xbf16, #tpu.memory_space<vmem>>, vector<192x576xbf16>
    %cst = arith.constant dense<0.000000e+00> : vector<2x8x576xf32>
    %3 = tpu.matmul %1, %2, %cst {dimension_numbers = #tpu.dot_dimension_numbers<[2], [0], [0, 1], [1], [0, 0, 0, 1, 1, 1], [], []>} : vector<2x8x192xbf16>, vector<192x576xbf16>, vector<2x8x576xf32> -> vector<2x8x576xf32>
    %4 = arith.truncf %3 : vector<2x8x576xf32> to vector<2x8x576xbf16>
    %c0_4 = arith.constant 0 : index
    %c0_5 = arith.constant 0 : index
    %c0_6 = arith.constant 0 : index
    %5 = vector.load %arg6[%c0_4, %c0_5, %c0_6] : memref<2x8x576xbf16, #tpu.memory_space<vmem>>, vector<2x8x576xbf16>
    tpu.vector_store %arg6[%c0_4, %c0_5, %c0_6], %4 {strides = array<i32>} : memref<2x8x576xbf16, #tpu.memory_space<vmem>>, vector<2x8x576xbf16>,
    %6 = tpu.iota {dimensions = array<i32: 1>} : vector<1x8x8xi32>
    %7 = tpu.iota {dimensions = array<i32: 2>} : vector<1x8x8xi32>
    %8 = arith.cmpi sle, %7, %6 : vector<1x8x8xi32>
    %cst_7 = arith.constant 0.000000e+00 : f32
    %cst_8 = arith.constant -1.000000e+30 : f32
    %9 = vector.broadcast %cst_7 : f32 to vector<1x8x8xf32>
    %10 = vector.broadcast %cst_8 : f32 to vector<1x8x8xf32>
    %11 = arith.select %8, %9, %10 : vector<1x8x8xi1>, vector<1x8x8xf32>
    %c0_9 = arith.constant 0 : index
    %c0_10 = arith.constant 0 : index
    %c0_11 = arith.constant 0 : index
    %12 = vector.load %arg6[%c0_9, %c0_10, %c0_11] : memref<2x8x576xbf16, #tpu.memory_space<vmem>>, vector<2x8x32xbf16>
    %c0_12 = arith.constant 0 : index
    %c0_13 = arith.constant 0 : index
    %c192 = arith.constant 192 : index
    %13 = vector.load %arg6[%c0_12, %c0_13, %c192] : memref<2x8x576xbf16, #tpu.memory_space<vmem>>, vector<2x8x32xbf16>
    %c0_14 = arith.constant 0 : index
    %c0_15 = arith.constant 0 : index
    %c384 = arith.constant 384 : index
    %14 = vector.load %arg6[%c0_14, %c0_15, %c384] : memref<2x8x576xbf16, #tpu.memory_space<vmem>>, vector<2x8x32xbf16>
    %cst_16 = arith.constant dense<0.000000e+00> : vector<2x8x8xf32>
    %15 = tpu.matmul %12, %13, %cst_16 {dimension_numbers = #tpu.dot_dimension_numbers<[2], [2], [1], [1], [0, 0, 0, 1, 1, 1], [0], [0]>} : vector<2x8x32xbf16>, vector<2x8x32xbf16>, vector<2x8x8xf32> -> vector<2x8x8xf32>
    %16 = vector.broadcast %11 : vector<1x8x8xf32> to vector<2x8x8xf32>
    %17 = arith.addf %15, %16 : vector<2x8x8xf32>
    %cst_17 = arith.constant dense<0xFF800000> : vector<2x8xf32>
    %18 = vector.multi_reduction <maximumf>, %17, %cst_17 [2] : vector<2x8x8xf32> to vector<2x8xf32>
    %19 = vector.shape_cast %18 : vector<2x8xf32> to vector<2x8x1xf32>
    %20 = vector.broadcast %19 : vector<2x8x1xf32> to vector<2x8x8xf32>
    %21 = arith.subf %17, %20 : vector<2x8x8xf32>
    %22 = math.exp %21 : vector<2x8x8xf32>
    %cst_18 = arith.constant dense<0.000000e+00> : vector<2x8xf32>
    %23 = vector.multi_reduction <add>, %22, %cst_18 [2] : vector<2x8x8xf32> to vector<2x8xf32>
    %24 = vector.shape_cast %23 : vector<2x8xf32> to vector<2x8x1xf32>
    %25 = tpu.reciprocal %24 {approx = true} : vector<2x8x1xf32> -> vector<2x8x1xf32>
    %26 = vector.broadcast %25 : vector<2x8x1xf32> to vector<2x8x8xf32>
    %27 = arith.mulf %22, %26 : vector<2x8x8xf32>
    %28 = arith.truncf %27 : vector<2x8x8xf32> to vector<2x8x8xbf16>
    %cst_19 = arith.constant dense<0.000000e+00> : vector<2x8x32xf32>
    %29 = tpu.matmul %28, %14, %cst_19 {dimension_numbers = #tpu.dot_dimension_numbers<[2], [1], [1], [2], [0, 0, 0, 1, 1, 2], [0], [0]>} : vector<2x8x8xbf16>, vector<2x8x32xbf16>, vector<2x8x32xf32> -> vector<2x8x32xf32>
    %30 = arith.truncf %29 : vector<2x8x32xf32> to vector<2x8x32xbf16>
    %c0_20 = arith.constant 0 : index
    %c0_21 = arith.constant 0 : index
    %c0_22 = arith.constant 0 : index
    %31 = vector.load %arg7[%c0_20, %c0_21, %c0_22] : memref<2x8x192xbf16, #tpu.memory_space<vmem>>, vector<2x8x32xbf16>
    tpu.vector_store %arg7[%c0_20, %c0_21, %c0_22], %30 {strides = array<i32>} : memref<2x8x192xbf16, #tpu.memory_space<vmem>>, vector<2x8x32xbf16>,
    %c0_23 = arith.constant 0 : index
    %c0_24 = arith.constant 0 : index
    %c32 = arith.constant 32 : index
    %32 = vector.load %arg6[%c0_23, %c0_24, %c32] : memref<2x8x576xbf16, #tpu.memory_space<vmem>>, vector<2x8x32xbf16>
    %c0_25 = arith.constant 0 : index
    %c0_26 = arith.constant 0 : index
    %c224 = arith.constant 224 : index
    %33 = vector.load %arg6[%c0_25, %c0_26, %c224] : memref<2x8x576xbf16, #tpu.memory_space<vmem>>, vector<2x8x32xbf16>
    %c0_27 = arith.constant 0 : index
    %c0_28 = arith.constant 0 : index
    %c416 = arith.constant 416 : index
    %34 = vector.load %arg6[%c0_27, %c0_28, %c416] : memref<2x8x576xbf16, #tpu.memory_space<vmem>>, vector<2x8x32xbf16>
    %cst_29 = arith.constant dense<0.000000e+00> : vector<2x8x8xf32>
    %35 = tpu.matmul %32, %33, %cst_29 {dimension_numbers = #tpu.dot_dimension_numbers<[2], [2], [1], [1], [0, 0, 0, 1, 1, 1], [0], [0]>} : vector<2x8x32xbf16>, vector<2x8x32xbf16>, vector<2x8x8xf32> -> vector<2x8x8xf32>
    %36 = vector.broadcast %11 : vector<1x8x8xf32> to vector<2x8x8xf32>
    %37 = arith.addf %35, %36 : vector<2x8x8xf32>
    %cst_30 = arith.constant dense<0xFF800000> : vector<2x8xf32>
    %38 = vector.multi_reduction <maximumf>, %37, %cst_30 [2] : vector<2x8x8xf32> to vector<2x8xf32>
    %39 = vector.shape_cast %38 : vector<2x8xf32> to vector<2x8x1xf32>
    %40 = vector.broadcast %39 : vector<2x8x1xf32> to vector<2x8x8xf32>
    %41 = arith.subf %37, %40 : vector<2x8x8xf32>
    %42 = math.exp %41 : vector<2x8x8xf32>
    %cst_31 = arith.constant dense<0.000000e+00> : vector<2x8xf32>
    %43 = vector.multi_reduction <add>, %42, %cst_31 [2] : vector<2x8x8xf32> to vector<2x8xf32>
    %44 = vector.shape_cast %43 : vector<2x8xf32> to vector<2x8x1xf32>
    %45 = tpu.reciprocal %44 {approx = true} : vector<2x8x1xf32> -> vector<2x8x1xf32>
    %46 = vector.broadcast %45 : vector<2x8x1xf32> to vector<2x8x8xf32>
    %47 = arith.mulf %42, %46 : vector<2x8x8xf32>
    %48 = arith.truncf %47 : vector<2x8x8xf32> to vector<2x8x8xbf16>
    %cst_32 = arith.constant dense<0.000000e+00> : vector<2x8x32xf32>
    %49 = tpu.matmul %48, %34, %cst_32 {dimension_numbers = #tpu.dot_dimension_numbers<[2], [1], [1], [2], [0, 0, 0, 1, 1, 2], [0], [0]>} : vector<2x8x8xbf16>, vector<2x8x32xbf16>, vector<2x8x32xf32> -> vector<2x8x32xf32>
    %50 = arith.truncf %49 : vector<2x8x32xf32> to vector<2x8x32xbf16>
    %c0_33 = arith.constant 0 : index
    %c0_34 = arith.constant 0 : index
    %c32_35 = arith.constant 32 : index
    %51 = vector.load %arg7[%c0_33, %c0_34, %c32_35] : memref<2x8x192xbf16, #tpu.memory_space<vmem>>, vector<2x8x32xbf16>
    tpu.vector_store %arg7[%c0_33, %c0_34, %c32_35], %50 {strides = array<i32>} : memref<2x8x192xbf16, #tpu.memory_space<vmem>>, vector<2x8x32xbf16>,
    %c0_36 = arith.constant 0 : index
    %c0_37 = arith.constant 0 : index
    %c64 = arith.constant 64 : index
    %52 = vector.load %arg6[%c0_36, %c0_37, %c64] : memref<2x8x576xbf16, #tpu.memory_space<vmem>>, vector<2x8x32xbf16>
    %c0_38 = arith.constant 0 : index
    %c0_39 = arith.constant 0 : index
    %c256 = arith.constant 256 : index
    %53 = vector.load %arg6[%c0_38, %c0_39, %c256] : memref<2x8x576xbf16, #tpu.memory_space<vmem>>, vector<2x8x32xbf16>
    %c0_40 = arith.constant 0 : index
    %c0_41 = arith.constant 0 : index
    %c448 = arith.constant 448 : index
    %54 = vector.load %arg6[%c0_40, %c0_41, %c448] : memref<2x8x576xbf16, #tpu.memory_space<vmem>>, vector<2x8x32xbf16>
    %cst_42 = arith.constant dense<0.000000e+00> : vector<2x8x8xf32>
    %55 = tpu.matmul %52, %53, %cst_42 {dimension_numbers = #tpu.dot_dimension_numbers<[2], [2], [1], [1], [0, 0, 0, 1, 1, 1], [0], [0]>} : vector<2x8x32xbf16>, vector<2x8x32xbf16>, vector<2x8x8xf32> -> vector<2x8x8xf32>
    %56 = vector.broadcast %11 : vector<1x8x8xf32> to vector<2x8x8xf32>
    %57 = arith.addf %55, %56 : vector<2x8x8xf32>
    %cst_43 = arith.constant dense<0xFF800000> : vector<2x8xf32>
    %58 = vector.multi_reduction <maximumf>, %57, %cst_43 [2] : vector<2x8x8xf32> to vector<2x8xf32>
    %59 = vector.shape_cast %58 : vector<2x8xf32> to vector<2x8x1xf32>
    %60 = vector.broadcast %59 : vector<2x8x1xf32> to vector<2x8x8xf32>
    %61 = arith.subf %57, %60 : vector<2x8x8xf32>
    %62 = math.exp %61 : vector<2x8x8xf32>
    %cst_44 = arith.constant dense<0.000000e+00> : vector<2x8xf32>
    %63 = vector.multi_reduction <add>, %62, %cst_44 [2] : vector<2x8x8xf32> to vector<2x8xf32>
    %64 = vector.shape_cast %63 : vector<2x8xf32> to vector<2x8x1xf32>
    %65 = tpu.reciprocal %64 {approx = true} : vector<2x8x1xf32> -> vector<2x8x1xf32>
    %66 = vector.broadcast %65 : vector<2x8x1xf32> to vector<2x8x8xf32>
    %67 = arith.mulf %62, %66 : vector<2x8x8xf32>
    %68 = arith.truncf %67 : vector<2x8x8xf32> to vector<2x8x8xbf16>
    %cst_45 = arith.constant dense<0.000000e+00> : vector<2x8x32xf32>
    %69 = tpu.matmul %68, %54, %cst_45 {dimension_numbers = #tpu.dot_dimension_numbers<[2], [1], [1], [2], [0, 0, 0, 1, 1, 2], [0], [0]>} : vector<2x8x8xbf16>, vector<2x8x32xbf16>, vector<2x8x32xf32> -> vector<2x8x32xf32>
    %70 = arith.truncf %69 : vector<2x8x32xf32> to vector<2x8x32xbf16>
    %c0_46 = arith.constant 0 : index
    %c0_47 = arith.constant 0 : index
    %c64_48 = arith.constant 64 : index
    %71 = vector.load %arg7[%c0_46, %c0_47, %c64_48] : memref<2x8x192xbf16, #tpu.memory_space<vmem>>, vector<2x8x32xbf16>
    tpu.vector_store %arg7[%c0_46, %c0_47, %c64_48], %70 {strides = array<i32>} : memref<2x8x192xbf16, #tpu.memory_space<vmem>>, vector<2x8x32xbf16>,
    %c0_49 = arith.constant 0 : index
    %c0_50 = arith.constant 0 : index
    %c96 = arith.constant 96 : index
    %72 = vector.load %arg6[%c0_49, %c0_50, %c96] : memref<2x8x576xbf16, #tpu.memory_space<vmem>>, vector<2x8x32xbf16>
    %c0_51 = arith.constant 0 : index
    %c0_52 = arith.constant 0 : index
    %c288 = arith.constant 288 : index
    %73 = vector.load %arg6[%c0_51, %c0_52, %c288] : memref<2x8x576xbf16, #tpu.memory_space<vmem>>, vector<2x8x32xbf16>
    %c0_53 = arith.constant 0 : index
    %c0_54 = arith.constant 0 : index
    %c480 = arith.constant 480 : index
    %74 = vector.load %arg6[%c0_53, %c0_54, %c480] : memref<2x8x576xbf16, #tpu.memory_space<vmem>>, vector<2x8x32xbf16>
    %cst_55 = arith.constant dense<0.000000e+00> : vector<2x8x8xf32>
    %75 = tpu.matmul %72, %73, %cst_55 {dimension_numbers = #tpu.dot_dimension_numbers<[2], [2], [1], [1], [0, 0, 0, 1, 1, 1], [0], [0]>} : vector<2x8x32xbf16>, vector<2x8x32xbf16>, vector<2x8x8xf32> -> vector<2x8x8xf32>
    %76 = vector.broadcast %11 : vector<1x8x8xf32> to vector<2x8x8xf32>
    %77 = arith.addf %75, %76 : vector<2x8x8xf32>
    %cst_56 = arith.constant dense<0xFF800000> : vector<2x8xf32>
    %78 = vector.multi_reduction <maximumf>, %77, %cst_56 [2] : vector<2x8x8xf32> to vector<2x8xf32>
    %79 = vector.shape_cast %78 : vector<2x8xf32> to vector<2x8x1xf32>
    %80 = vector.broadcast %79 : vector<2x8x1xf32> to vector<2x8x8xf32>
    %81 = arith.subf %77, %80 : vector<2x8x8xf32>
    %82 = math.exp %81 : vector<2x8x8xf32>
    %cst_57 = arith.constant dense<0.000000e+00> : vector<2x8xf32>
    %83 = vector.multi_reduction <add>, %82, %cst_57 [2] : vector<2x8x8xf32> to vector<2x8xf32>
    %84 = vector.shape_cast %83 : vector<2x8xf32> to vector<2x8x1xf32>
    %85 = tpu.reciprocal %84 {approx = true} : vector<2x8x1xf32> -> vector<2x8x1xf32>
    %86 = vector.broadcast %85 : vector<2x8x1xf32> to vector<2x8x8xf32>
    %87 = arith.mulf %82, %86 : vector<2x8x8xf32>
    %88 = arith.truncf %87 : vector<2x8x8xf32> to vector<2x8x8xbf16>
    %cst_58 = arith.constant dense<0.000000e+00> : vector<2x8x32xf32>
    %89 = tpu.matmul %88, %74, %cst_58 {dimension_numbers = #tpu.dot_dimension_numbers<[2], [1], [1], [2], [0, 0, 0, 1, 1, 2], [0], [0]>} : vector<2x8x8xbf16>, vector<2x8x32xbf16>, vector<2x8x32xf32> -> vector<2x8x32xf32>
    %90 = arith.truncf %89 : vector<2x8x32xf32> to vector<2x8x32xbf16>
    %c0_59 = arith.constant 0 : index
    %c0_60 = arith.constant 0 : index
    %c96_61 = arith.constant 96 : index
    %91 = vector.load %arg7[%c0_59, %c0_60, %c96_61] : memref<2x8x192xbf16, #tpu.memory_space<vmem>>, vector<2x8x32xbf16>
    tpu.vector_store %arg7[%c0_59, %c0_60, %c96_61], %90 {strides = array<i32>} : memref<2x8x192xbf16, #tpu.memory_space<vmem>>, vector<2x8x32xbf16>,
    %c0_62 = arith.constant 0 : index
    %c0_63 = arith.constant 0 : index
    %c128 = arith.constant 128 : index
    %92 = vector.load %arg6[%c0_62, %c0_63, %c128] : memref<2x8x576xbf16, #tpu.memory_space<vmem>>, vector<2x8x32xbf16>
    %c0_64 = arith.constant 0 : index
    %c0_65 = arith.constant 0 : index
    %c320 = arith.constant 320 : index
    %93 = vector.load %arg6[%c0_64, %c0_65, %c320] : memref<2x8x576xbf16, #tpu.memory_space<vmem>>, vector<2x8x32xbf16>
    %c0_66 = arith.constant 0 : index
    %c0_67 = arith.constant 0 : index
    %c512 = arith.constant 512 : index
    %94 = vector.load %arg6[%c0_66, %c0_67, %c512] : memref<2x8x576xbf16, #tpu.memory_space<vmem>>, vector<2x8x32xbf16>
    %cst_68 = arith.constant dense<0.000000e+00> : vector<2x8x8xf32>
    %95 = tpu.matmul %92, %93, %cst_68 {dimension_numbers = #tpu.dot_dimension_numbers<[2], [2], [1], [1], [0, 0, 0, 1, 1, 1], [0], [0]>} : vector<2x8x32xbf16>, vector<2x8x32xbf16>, vector<2x8x8xf32> -> vector<2x8x8xf32>
    %96 = vector.broadcast %11 : vector<1x8x8xf32> to vector<2x8x8xf32>
    %97 = arith.addf %95, %96 : vector<2x8x8xf32>
    %cst_69 = arith.constant dense<0xFF800000> : vector<2x8xf32>
    %98 = vector.multi_reduction <maximumf>, %97, %cst_69 [2] : vector<2x8x8xf32> to vector<2x8xf32>
    %99 = vector.shape_cast %98 : vector<2x8xf32> to vector<2x8x1xf32>
    %100 = vector.broadcast %99 : vector<2x8x1xf32> to vector<2x8x8xf32>
    %101 = arith.subf %97, %100 : vector<2x8x8xf32>
    %102 = math.exp %101 : vector<2x8x8xf32>
    %cst_70 = arith.constant dense<0.000000e+00> : vector<2x8xf32>
    %103 = vector.multi_reduction <add>, %102, %cst_70 [2] : vector<2x8x8xf32> to vector<2x8xf32>
    %104 = vector.shape_cast %103 : vector<2x8xf32> to vector<2x8x1xf32>
    %105 = tpu.reciprocal %104 {approx = true} : vector<2x8x1xf32> -> vector<2x8x1xf32>
    %106 = vector.broadcast %105 : vector<2x8x1xf32> to vector<2x8x8xf32>
    %107 = arith.mulf %102, %106 : vector<2x8x8xf32>
    %108 = arith.truncf %107 : vector<2x8x8xf32> to vector<2x8x8xbf16>
    %cst_71 = arith.constant dense<0.000000e+00> : vector<2x8x32xf32>
    %109 = tpu.matmul %108, %94, %cst_71 {dimension_numbers = #tpu.dot_dimension_numbers<[2], [1], [1], [2], [0, 0, 0, 1, 1, 2], [0], [0]>} : vector<2x8x8xbf16>, vector<2x8x32xbf16>, vector<2x8x32xf32> -> vector<2x8x32xf32>
    %110 = arith.truncf %109 : vector<2x8x32xf32> to vector<2x8x32xbf16>
    %c0_72 = arith.constant 0 : index
    %c0_73 = arith.constant 0 : index
    %c128_74 = arith.constant 128 : index
    %111 = vector.load %arg7[%c0_72, %c0_73, %c128_74] : memref<2x8x192xbf16, #tpu.memory_space<vmem>>, vector<2x8x32xbf16>
    tpu.vector_store %arg7[%c0_72, %c0_73, %c128_74], %110 {strides = array<i32>} : memref<2x8x192xbf16, #tpu.memory_space<vmem>>, vector<2x8x32xbf16>,
    %c0_75 = arith.constant 0 : index
    %c0_76 = arith.constant 0 : index
    %c160 = arith.constant 160 : index
    %112 = vector.load %arg6[%c0_75, %c0_76, %c160] : memref<2x8x576xbf16, #tpu.memory_space<vmem>>, vector<2x8x32xbf16>
    %c0_77 = arith.constant 0 : index
    %c0_78 = arith.constant 0 : index
    %c352 = arith.constant 352 : index
    %113 = vector.load %arg6[%c0_77, %c0_78, %c352] : memref<2x8x576xbf16, #tpu.memory_space<vmem>>, vector<2x8x32xbf16>
    %c0_79 = arith.constant 0 : index
    %c0_80 = arith.constant 0 : index
    %c544 = arith.constant 544 : index
    %114 = vector.load %arg6[%c0_79, %c0_80, %c544] : memref<2x8x576xbf16, #tpu.memory_space<vmem>>, vector<2x8x32xbf16>
    %cst_81 = arith.constant dense<0.000000e+00> : vector<2x8x8xf32>
    %115 = tpu.matmul %112, %113, %cst_81 {dimension_numbers = #tpu.dot_dimension_numbers<[2], [2], [1], [1], [0, 0, 0, 1, 1, 1], [0], [0]>} : vector<2x8x32xbf16>, vector<2x8x32xbf16>, vector<2x8x8xf32> -> vector<2x8x8xf32>
    %116 = vector.broadcast %11 : vector<1x8x8xf32> to vector<2x8x8xf32>
    %117 = arith.addf %115, %116 : vector<2x8x8xf32>
    %cst_82 = arith.constant dense<0xFF800000> : vector<2x8xf32>
    %118 = vector.multi_reduction <maximumf>, %117, %cst_82 [2] : vector<2x8x8xf32> to vector<2x8xf32>
    %119 = vector.shape_cast %118 : vector<2x8xf32> to vector<2x8x1xf32>
    %120 = vector.broadcast %119 : vector<2x8x1xf32> to vector<2x8x8xf32>
    %121 = arith.subf %117, %120 : vector<2x8x8xf32>
    %122 = math.exp %121 : vector<2x8x8xf32>
    %cst_83 = arith.constant dense<0.000000e+00> : vector<2x8xf32>
    %123 = vector.multi_reduction <add>, %122, %cst_83 [2] : vector<2x8x8xf32> to vector<2x8xf32>
    %124 = vector.shape_cast %123 : vector<2x8xf32> to vector<2x8x1xf32>
    %125 = tpu.reciprocal %124 {approx = true} : vector<2x8x1xf32> -> vector<2x8x1xf32>
    %126 = vector.broadcast %125 : vector<2x8x1xf32> to vector<2x8x8xf32>
    %127 = arith.mulf %122, %126 : vector<2x8x8xf32>
    %128 = arith.truncf %127 : vector<2x8x8xf32> to vector<2x8x8xbf16>
    %cst_84 = arith.constant dense<0.000000e+00> : vector<2x8x32xf32>
    %129 = tpu.matmul %128, %114, %cst_84 {dimension_numbers = #tpu.dot_dimension_numbers<[2], [1], [1], [2], [0, 0, 0, 1, 1, 2], [0], [0]>} : vector<2x8x8xbf16>, vector<2x8x32xbf16>, vector<2x8x32xf32> -> vector<2x8x32xf32>
    %130 = arith.truncf %129 : vector<2x8x32xf32> to vector<2x8x32xbf16>
    %c0_85 = arith.constant 0 : index
    %c0_86 = arith.constant 0 : index
    %c160_87 = arith.constant 160 : index
    %131 = vector.load %arg7[%c0_85, %c0_86, %c160_87] : memref<2x8x192xbf16, #tpu.memory_space<vmem>>, vector<2x8x32xbf16>
    tpu.vector_store %arg7[%c0_85, %c0_86, %c160_87], %130 {strides = array<i32>} : memref<2x8x192xbf16, #tpu.memory_space<vmem>>, vector<2x8x32xbf16>,
    %c0_88 = arith.constant 0 : index
    %c0_89 = arith.constant 0 : index
    %c0_90 = arith.constant 0 : index
    %132 = vector.load %arg7[%c0_88, %c0_89, %c0_90] : memref<2x8x192xbf16, #tpu.memory_space<vmem>>, vector<2x8x192xbf16>
    %c0_91 = arith.constant 0 : index
    %c0_92 = arith.constant 0 : index
    %133 = vector.load %arg3[%c0_91, %c0_92] : memref<192x192xbf16, #tpu.memory_space<vmem>>, vector<192x192xbf16>
    %cst_93 = arith.constant dense<0.000000e+00> : vector<2x8x192xf32>
    %134 = tpu.matmul %132, %133, %cst_93 {dimension_numbers = #tpu.dot_dimension_numbers<[2], [0], [0, 1], [1], [0, 0, 0, 1, 1, 1], [], []>} : vector<2x8x192xbf16>, vector<192x192xbf16>, vector<2x8x192xf32> -> vector<2x8x192xf32>
    %c0_94 = arith.constant 0 : index
    %c0_95 = arith.constant 0 : index
    %135 = vector.load %arg4[%c0_94, %c0_95] : memref<1x192xf32, #tpu.memory_space<vmem>>, vector<1x192xf32>
    %136 = vector.shape_cast %135 : vector<1x192xf32> to vector<1x1x192xf32>
    %137 = vector.broadcast %136 : vector<1x1x192xf32> to vector<2x8x192xf32>
    %138 = arith.addf %134, %137 : vector<2x8x192xf32>
    %c0_96 = arith.constant 0 : index
    %c0_97 = arith.constant 0 : index
    %c0_98 = arith.constant 0 : index
    %139 = vector.load %arg5[%c0_96, %c0_97, %c0_98] : memref<2x8x192xf32, #tpu.memory_space<vmem>>, vector<2x8x192xf32>
    tpu.vector_store %arg5[%c0_96, %c0_97, %c0_98], %138 {strides = array<i32>} : memref<2x8x192xf32, #tpu.memory_space<vmem>>, vector<2x8x192xf32>,
    return
  }
  func.func @transform_0(%arg0: i32) -> (i32, i32, i32) {
    %c0_i32 = arith.constant 0 : i32
    %c0_i32_0 = arith.constant 0 : i32
    %c0_i32_1 = arith.constant 0 : i32
    return %arg0, %c0_i32, %c0_i32_0 : i32, i32, i32
  }
  func.func @transform_1(%arg0: i32) -> (i32, i32) {
    %c0_i32 = arith.constant 0 : i32
    %c0_i32_0 = arith.constant 0 : i32
    %c0_i32_1 = arith.constant 0 : i32
    return %c0_i32, %c0_i32_0 : i32, i32
  }
  func.func @transform_2(%arg0: i32) -> (i32, i32) {
    %c0_i32 = arith.constant 0 : i32
    %c0_i32_0 = arith.constant 0 : i32
    %c0_i32_1 = arith.constant 0 : i32
    return %c0_i32, %c0_i32_0 : i32, i32
  }
  func.func @transform_3(%arg0: i32) -> (i32, i32) {
    %c0_i32 = arith.constant 0 : i32
    %c0_i32_0 = arith.constant 0 : i32
    %c0_i32_1 = arith.constant 0 : i32
    return %c0_i32, %c0_i32_0 : i32, i32
  }
  func.func @transform_4(%arg0: i32) -> (i32, i32, i32) {
    %c0_i32 = arith.constant 0 : i32
    %c0_i32_0 = arith.constant 0 : i32
    %c0_i32_1 = arith.constant 0 : i32
    return %arg0, %c0_i32, %c0_i32_0 : i32, i32, i32
  }
}

</mosaic_0001>

<llo_original>
// kernel: tpu_custom_call.1
$region0: #{tpu_custom_call.1}
  #allocation0 [shape = 'u32[]', space=smem, size = 0x4, offset = 0x4, fixed_abs, tag = 'smem constant byte address 0x4 - core index']
  #allocation1 [shape = 'u32[144,128]{1,0:T(1,128)}', space=vmem, size = 0x12000, scoped, tag = 'internal scratch']
  #allocation2 [shape = 'bf16[2,8,576]{2,1,0:T(8,128)(2,1)}', space=vmem, size = 0x5000, scoped, tag = 'scratch operand']
  #allocation3 [shape = 'bf16[2,8,192]{2,1,0:T(8,128)(2,1)}', space=vmem, size = 0x2000, scoped, tag = 'scratch operand']
  %s0 = inlined_call_operand.hbm [shape: f32[4,8,192], index: 0, kind: input, shape index: {}]
  %s1 = inlined_call_operand.hbm [shape: bf16[192,576], index: 1, kind: input, shape index: {}]
  %s2 = inlined_call_operand.hbm [shape: bf16[192,192], index: 2, kind: input, shape index: {}]
  %s3 = inlined_call_operand.vmem [shape: f32[1,192], index: 3, kind: input, shape index: {}]
  %s4 = inlined_call_operand.hbm [shape: f32[4,8,192], index: 4, kind: output, shape index: {}]
  %s5 = sld [smem:[#allocation0]]
  $region61: #{tpu_custom_call.1} parent=0
    _
  %s7 = ssub.s32 1, %s5
  %s8 = scalar_select 0, %s7, %s5
  $region1: #{tpu_custom_call.1} parent=0
    #allocation4 [shape = 'u8[32768]{0}', space=vmem, size = 0x8000, scoped, tag = 'input window, operand 0']
    #allocation5 [shape = 's32[2]{0}', space=sflag, size = 0x8, scoped, tag = 'scoped memory for tpu_custom_call.1']
    #allocation6 [shape = 's32[2]{0}', space=sflag, size = 0x8, scoped, tag = 'scoped memory for tpu_custom_call.1']
    #allocation7 [shape = 'u8[245760]{0}', space=vmem, size = 0x3c000, scoped, tag = 'input window, operand 1, single buffered']
    #allocation8 [shape = 's32[1]{0}', space=sflag, size = 0x4, scoped, tag = 'scoped memory for tpu_custom_call.1']
    #allocation9 [shape = 'u8[98304]{0}', space=vmem, size = 0x18000, scoped, tag = 'input window, operand 2, single buffered']
    #allocation10 [shape = 'u8[32768]{0}', space=vmem, size = 0x8000, scoped, tag = 'output window, operand 0']
    %9 = vsyncpa [#allocation5], 0
    %s10 = scalar_lea.sflag [#allocation5], 1
    %11 = vsyncpa %s10, 0
    %12 = vsyncpa [#allocation8], 0
    %13 = vsyncpa [#allocation6], 0
    %s14 = scalar_lea.sflag [#allocation6], 1
    %15 = vsyncpa %s14, 0
    loop: start=0, step=1, limit=4
    $region2: #{tpu_custom_call.1} parent=1 // loop_pre_header
      _
    $region3: #{tpu_custom_call.1} parent=1 // loop_header
      %s17 = sphi 0, %s21
      %p18 = scmp.ge.s32.totalorder %s17, 4
      %s27 = sphi 0, %s29
      %s30 = sphi 0, %s27
      %s31 = sphi 0, %s30
      %s47 = sphi 0, %s31
      %s51 = sphi 0, %s51
      %s53 = sphi 0, %s51
      %s54 = sphi 0, %s53
      %s68 = sphi 0, %s54
      %s72 = sphi 0, %s72
      %s74 = sphi 0, %s72
      %s75 = sphi 0, %s74
      %s89 = sphi 0, %s75
      %s93 = sphi 0, %s93
      %s95 = sphi 0, %s93
      %s96 = sphi 0, %s95
      %s110 = sphi 0, %s96
      %s116 = sphi 0, %s118
      %s119 = sphi 0, %s116
      %s120 = sphi 0, %s119
      %s136 = sphi 0, %s120
    $region4: #{tpu_custom_call.1} parent=1 // loop_header_branch
      %20 = sbr.rel (%p18) target = $region8
    $region5: #{tpu_custom_call.1} parent=1 // loop_body
      %s22 = ssub.s32 %s17, 1
      %s23 = ssub.s32 %s17, 2
      %s24 = sadd.s32 %s17, 1
      %s25 = ssub.s32 %s17, %s24
      %p26 = scmp.eq.s32.totalorder %s25, 0
      %s28 = sadd.s32 %s27, 1
      %s29 = scalar_select %p26, %s27, %s28
      %p32 = pneg %p26
      %p33 = scmp.eq.s32.totalorder %s17, 1
      %p34 = por %p32, %p33
      %p35 = scmp.ne.s32.totalorder %s27, %s30
      %p36 = scmp.eq.s32.totalorder %s17, 0
      %p37 = por %p35, %p36
      %p38 = scmp.ne.s32.totalorder %s27, %s30
      %p39 = scmp.eq.s32.totalorder %s22, 1
      %p40 = por %p38, %p39
      %p41 = scmp.ne.s32.totalorder %s30, %s31
      %p42 = scmp.eq.s32.totalorder %s22, 0
      %p43 = por %p41, %p42
      %p44 = scmp.ne.s32.totalorder %s30, %s31
      %p45 = scmp.eq.s32.totalorder %s23, 1
      %p46 = por %p44, %p45
      %p48 = scmp.ne.s32.totalorder %s31, %s47
      %p49 = scmp.eq.s32.totalorder %s23, 0
      %p50 = por %p48, %p49
      %s52 = sadd.s32 %s51, 1
      %p55 = scmp.eq.s32.totalorder %s17, 1
      %p56 = scmp.ne.s32.totalorder %s51, %s53
      %p57 = scmp.eq.s32.totalorder %s17, 0
      %p58 = por %p56, %p57
      %p59 = scmp.ne.s32.totalorder %s51, %s53
      %p60 = scmp.eq.s32.totalorder %s22, 1
      %p61 = por %p59, %p60
      %p62 = scmp.ne.s32.totalorder %s53, %s54
      %p63 = scmp.eq.s32.totalorder %s22, 0
      %p64 = por %p62, %p63
      %p65 = scmp.ne.s32.totalorder %s53, %s54
      %p66 = scmp.eq.s32.totalorder %s23, 1
      %p67 = por %p65, %p66
      %p69 = scmp.ne.s32.totalorder %s54, %s68
      %p70 = scmp.eq.s32.totalorder %s23, 0
      %p71 = por %p69, %p70
      %s73 = sadd.s32 %s72, 1
      %p76 = scmp.eq.s32.totalorder %s17, 1
      %p77 = scmp.ne.s32.totalorder %s72, %s74
      %p78 = scmp.eq.s32.totalorder %s17, 0
      %p79 = por %p77, %p78
      %p80 = scmp.ne.s32.totalorder %s72, %s74
      %p81 = scmp.eq.s32.totalorder %s22, 1
      %p82 = por %p80, %p81
      %p83 = scmp.ne.s32.totalorder %s74, %s75
      %p84 = scmp.eq.s32.totalorder %s22, 0
      %p85 = por %p83, %p84
      %p86 = scmp.ne.s32.totalorder %s74, %s75
      %p87 = scmp.eq.s32.totalorder %s23, 1
      %p88 = por %p86, %p87
      %p90 = scmp.ne.s32.totalorder %s75, %s89
      %p91 = scmp.eq.s32.totalorder %s23, 0
      %p92 = por %p90, %p91
      %s94 = sadd.s32 %s93, 1
      %p97 = scmp.eq.s32.totalorder %s17, 1
      %p98 = scmp.ne.s32.totalorder %s93, %s95
      %p99 = scmp.eq.s32.totalorder %s17, 0
      %p100 = por %p98, %p99
      %p101 = scmp.ne.s32.totalorder %s93, %s95
      %p102 = scmp.eq.s32.totalorder %s22, 1
      %p103 = por %p101, %p102
      %p104 = scmp.ne.s32.totalorder %s95, %s96
      %p105 = scmp.eq.s32.totalorder %s22, 0
      %p106 = por %p104, %p105
      %p107 = scmp.ne.s32.totalorder %s95, %s96
      %p108 = scmp.eq.s32.totalorder %s23, 1
      %p109 = por %p107, %p108
      %p111 = scmp.ne.s32.totalorder %s96, %s110
      %p112 = scmp.eq.s32.totalorder %s23, 0
      %p113 = por %p111, %p112
      %s114 = ssub.s32 %s17, %s24
      %p115 = scmp.eq.s32.totalorder %s114, 0
      %s117 = sadd.s32 %s116, 1
      %s118 = scalar_select %p115, %s116, %s117
      %p121 = pneg %p115
      %p122 = scmp.eq.s32.totalorder %s17, 1
      %p123 = por %p121, %p122
      %p124 = scmp.ne.s32.totalorder %s116, %s119
      %p125 = scmp.eq.s32.totalorder %s17, 0
      %p126 = por %p124, %p125
      %p127 = scmp.ne.s32.totalorder %s116, %s119
      %p128 = scmp.eq.s32.totalorder %s22, 1
      %p129 = por %p127, %p128
      %p130 = scmp.ne.s32.totalorder %s119, %s120
      %p131 = scmp.eq.s32.totalorder %s22, 0
      %p132 = por %p130, %p131
      %p133 = scmp.ne.s32.totalorder %s119, %s120
      %p134 = scmp.eq.s32.totalorder %s23, 1
      %p135 = por %p133, %p134
      %p137 = scmp.ne.s32.totalorder %s120, %s136
      %p138 = scmp.eq.s32.totalorder %s23, 0
      %p139 = por %p137, %p138
      %p140 = scmp.le.s32.totalorder 1, %s17
      %p141 = scmp.lt.s32.totalorder %s17, 3
      %p142 = pnand %p140, %p141
      %p143 = pneg %p142
      // Predicated region
      $region9: #{tpu_custom_call.1} parent=5 // pred_check
        _
      $region10: #{tpu_custom_call.1} parent=5 // pred_check_branch
        %145 = sbr.rel (%p142) target = $region12
      $region11: #{tpu_custom_call.1} parent=5 // pred_region
        %s146 = ssub.s32 %s17, 1
        // Predicated region
        $region13: #{tpu_custom_call.1} parent=11 // pred_check
          %p147 = pneg %p64
        $region14: #{tpu_custom_call.1} parent=11 // pred_check_branch
          %149 = sbr.rel (%p147) target = $region16
        $region15: #{tpu_custom_call.1} parent=11 // pred_region
          %s151 = ssub.s32 7680, 7680
          %152 = vsyncadd [#allocation8], %s151
          %s153 = sshll.u32 [#allocation7], 4
          %s154 = int_to_ptr.vmem [resolvable:$true] %s153
          %159 = dma.hbm_to_vmem [thread:$0]  %s1, 7680, %s154, [#allocation8], 320, 320, 20
        $region16: #{tpu_custom_call.1} parent=11 // pred_fallthru
          _
        // Predicated region
        $region17: #{tpu_custom_call.1} parent=11 // pred_check
          %p160 = pneg %p85
        $region18: #{tpu_custom_call.1} parent=11 // pred_check_branch
          %162 = sbr.rel (%p160) target = $region20
        $region19: #{tpu_custom_call.1} parent=11 // pred_region
          %s164 = ssub.s32 3072, 3072
          %165 = vsyncadd [#allocation8], %s164
          %s166 = sshll.u32 [#allocation9], 4
          %s167 = int_to_ptr.vmem [resolvable:$true] %s166
          %172 = dma.hbm_to_vmem [thread:$0]  %s2, 3072, %s167, [#allocation8], 128, 128, 8
        $region20: #{tpu_custom_call.1} parent=11 // pred_fallthru
          _
        // Predicated region
        $region21: #{tpu_custom_call.1} parent=11 // pred_check
          %p173 = pneg %p106
        $region22: #{tpu_custom_call.1} parent=11 // pred_check_branch
          %175 = sbr.rel (%p173) target = $region24
        $region23: #{tpu_custom_call.1} parent=11 // pred_region
          _
        $region24: #{tpu_custom_call.1} parent=11 // pred_fallthru
          _
      $region12: #{tpu_custom_call.1} parent=5 // pred_fallthru
        _
      %p176 = scmp.lt.s32.totalorder %s17, 2
      // Predicated region
      $region25: #{tpu_custom_call.1} parent=5 // pred_check
        %p177 = pneg %p176
      $region26: #{tpu_custom_call.1} parent=5 // pred_check_branch
        %179 = sbr.rel (%p177) target = $region28
      $region27: #{tpu_custom_call.1} parent=5 // pred_region
        // Predicated region
        $region29: #{tpu_custom_call.1} parent=27 // pred_check
          %p180 = pneg %p37
        $region30: #{tpu_custom_call.1} parent=27 // pred_check_branch
          %182 = sbr.rel (%p180) target = $region32
        $region31: #{tpu_custom_call.1} parent=27 // pred_region
          %s183 = sand.u32 %s27, 1
          %s184 = scalar_lea.sflag [#allocation5], %s183
          %s185 = sand.u32 %s27, 1
          %s186 = smul.addr %s185, 32
          %s187 = scalar_lea.vmem [#allocation4], %s186
          %s188 = smul.u32 2, %s17
          %s190 = ssub.s32 512, 512
          %191 = vsyncadd %s184, %s190
          %s192 = smul.addr %s188, 2
          %s193 = smul.addr %s192, 128
          %s194 = scalar_lea.hbm %s0, %s193
          %s195 = sshll.u32 %s187, 4
          %s196 = int_to_ptr.vmem [resolvable:$true] %s195
          %201 = dma.hbm_to_vmem [thread:$0]  %s194, 512, %s196, %s184, 256, 256, 16
        $region32: #{tpu_custom_call.1} parent=27 // pred_fallthru
          _
      $region28: #{tpu_custom_call.1} parent=5 // pred_fallthru
        _
      %p202 = scmp.le.s32.totalorder 1, %s17
      %p203 = scmp.lt.s32.totalorder %s17, 3
      %p204 = pnand %p202, %p203
      %p205 = pneg %p204
      // Predicated region
      $region33: #{tpu_custom_call.1} parent=5 // pred_check
        _
      $region34: #{tpu_custom_call.1} parent=5 // pred_check_branch
        %207 = sbr.rel (%p204) target = $region36
      $region35: #{tpu_custom_call.1} parent=5 // pred_region
        %s208 = ssub.s32 %s17, 1
        %s209 = sand.u32 %s30, 1
        %s210 = scalar_lea.sflag [#allocation5], %s209
        %s211 = sand.u32 %s30, 1
        %s212 = smul.addr %s211, 32
        %s213 = scalar_lea.vmem [#allocation4], %s212
        // Predicated region
        $region37: #{tpu_custom_call.1} parent=35 // pred_check
          %p214 = pneg %p43
        $region38: #{tpu_custom_call.1} parent=35 // pred_check_branch
          %216 = sbr.rel (%p214) target = $region40
        $region39: #{tpu_custom_call.1} parent=35 // pred_region
          %217 = dma.done %s210, 512
        $region40: #{tpu_custom_call.1} parent=35 // pred_fallthru
          _
        // Predicated region
        $region41: #{tpu_custom_call.1} parent=35 // pred_check
          %p218 = pneg %p64
        $region42: #{tpu_custom_call.1} parent=35 // pred_check_branch
          %220 = sbr.rel (%p218) target = $region44
        $region43: #{tpu_custom_call.1} parent=35 // pred_region
          %221 = dma.done [#allocation8], 7680
        $region44: #{tpu_custom_call.1} parent=35 // pred_fallthru
          _
        // Predicated region
        $region45: #{tpu_custom_call.1} parent=35 // pred_check
          %p222 = pneg %p85
        $region46: #{tpu_custom_call.1} parent=35 // pred_check_branch
          %224 = sbr.rel (%p222) target = $region48
        $region47: #{tpu_custom_call.1} parent=35 // pred_region
          %225 = dma.done [#allocation8], 3072
        $region48: #{tpu_custom_call.1} parent=35 // pred_fallthru
          _
        %s226 = sand.u32 %s30, 1
        %s227 = scalar_lea.sflag [#allocation5], %s226
        %s228 = sand.u32 %s30, 1
        %s229 = smul.addr %s228, 32
        %s230 = scalar_lea.vmem [#allocation4], %s229
        %p231 = pneg %p43
        %p232 = pneg %p40
        %p233 = pneg %p64
        %p234 = pneg %p61
        %p235 = pneg %p85
        %p236 = pneg %p82
        %p237 = pneg %p106
        %p238 = pneg %p103
        %p239 = pneg %p132
        %p240 = pneg %p129
        %s241 = sand.u32 %s119, 1
        %s242 = scalar_lea.sflag [#allocation6], %s241
        %s243 = sand.u32 %s119, 1
        %s244 = smul.addr %s243, 32
        %s245 = scalar_lea.vmem [#allocation10], %s244
        %s246 = smul.u32 2, %s22
        %s247 = smul.u32 2, %s22
        %v249 = vld [vmem:[%s213] sm:$0xff]
        %v250 = vld [vmem:[%s213 + $0x8] sm:$0xff]
        %v251 = vld [vmem:[%s213 + $0x10] sm:$0xff]
        %v252 = vld [vmem:[%s213 + $0x18] sm:$0xff]
        %v253 = vpack.c.bf16 %v249, %v249
        %v254 = vpack.c.bf16 %v250, %v250
        %v255 = vpack.c.bf16 %v251, %v251
        %v256 = vpack.c.bf16 %v252, %v252
        %v257 = vld [vmem:[#allocation7] sm:$0xff]
        %v258 = vld [vmem:[#allocation7 + $0x8] sm:$0xff]
        %v259 = vld [vmem:[#allocation7 + $0x10] sm:$0xf]
        %v260 = vld [vmem:[#allocation7 + $0x14] sm:$0xff]
        %v261 = vld [vmem:[#allocation7 + $0x1c] sm:$0xff]
        %v262 = vld [vmem:[#allocation7 + $0x24] sm:$0xf]
        %v263 = vld [vmem:[#allocation7 + $0x28] sm:$0xff]
        %v264 = vld [vmem:[#allocation7 + $0x30] sm:$0xff]
        %v265 = vld [vmem:[#allocation7 + $0x38] sm:$0xf]
        %v266 = vld [vmem:[#allocation7 + $0x3c] sm:$0xff]
        %v267 = vld [vmem:[#allocation7 + $0x44] sm:$0xff]
        %v268 = vld [vmem:[#allocation7 + $0x4c] sm:$0xf]
        %v269 = vld [vmem:[#allocation7 + $0x50] sm:$0xff]
        %v270 = vld [vmem:[#allocation7 + $0x58] sm:$0xff]
        %v271 = vld [vmem:[#allocation7 + $0x60] sm:$0xf]
        %v272 = vld [vmem:[#allocation7 + $0x64] sm:$0xff]
        %v273 = vld [vmem:[#allocation7 + $0x6c] sm:$0xff]
        %v274 = vld [vmem:[#allocation7 + $0x74] sm:$0xf]
        %v275 = vld [vmem:[#allocation7 + $0x78] sm:$0xff]
        %v276 = vld [vmem:[#allocation7 + $0x80] sm:$0xff]
        %v277 = vld [vmem:[#allocation7 + $0x88] sm:$0xf]
        %v278 = vld [vmem:[#allocation7 + $0x8c] sm:$0xff]
        %v279 = vld [vmem:[#allocation7 + $0x94] sm:$0xff]
        %v280 = vld [vmem:[#allocation7 + $0x9c] sm:$0xf]
        %v281 = vld [vmem:[#allocation7 + $0xa0] sm:$0xff]
        %v282 = vld [vmem:[#allocation7 + $0xa8] sm:$0xff]
        %v283 = vld [vmem:[#allocation7 + $0xb0] sm:$0xf]
        %v284 = vld [vmem:[#allocation7 + $0xb4] sm:$0xff]
        %v285 = vld [vmem:[#allocation7 + $0xbc] sm:$0xff]
        %v286 = vld [vmem:[#allocation7 + $0xc4] sm:$0xf]
        %v287 = vld [vmem:[#allocation7 + $0xc8] sm:$0xff]
        %v288 = vld [vmem:[#allocation7 + $0xd0] sm:$0xff]
        %v289 = vld [vmem:[#allocation7 + $0xd8] sm:$0xf]
        %v290 = vld [vmem:[#allocation7 + $0xdc] sm:$0xff]
        %v291 = vld [vmem:[#allocation7 + $0xe4] sm:$0xff]
        %v292 = vld [vmem:[#allocation7 + $0xec] sm:$0xf]
        %v293 = vld [vmem:[#allocation7 + $0xf0] sm:$0xff]
        %v294 = vld [vmem:[#allocation7 + $0xf8] sm:$0xff]
        %v295 = vld [vmem:[#allocation7 + $0x100] sm:$0xf]
        %v296 = vld [vmem:[#allocation7 + $0x104] sm:$0xff]
        %v297 = vld [vmem:[#allocation7 + $0x10c] sm:$0xff]
        %v298 = vld [vmem:[#allocation7 + $0x114] sm:$0xf]
        %v299 = vld [vmem:[#allocation7 + $0x118] sm:$0xff]
        %v300 = vld [vmem:[#allocation7 + $0x120] sm:$0xff]
        %v301 = vld [vmem:[#allocation7 + $0x128] sm:$0xf]
        %v302 = vld [vmem:[#allocation7 + $0x12c] sm:$0xff]
        %v303 = vld [vmem:[#allocation7 + $0x134] sm:$0xff]
        %v304 = vld [vmem:[#allocation7 + $0x13c] sm:$0xf]
        %v305 = vld [vmem:[#allocation7 + $0x140] sm:$0xff]
        %v306 = vld [vmem:[#allocation7 + $0x148] sm:$0xff]
        %v307 = vld [vmem:[#allocation7 + $0x150] sm:$0xf]
        %v308 = vld [vmem:[#allocation7 + $0x154] sm:$0xff]
        %v309 = vld [vmem:[#allocation7 + $0x15c] sm:$0xff]
        %v310 = vld [vmem:[#allocation7 + $0x164] sm:$0xf]
        %v311 = vld [vmem:[#allocation7 + $0x168] sm:$0xff]
        %v312 = vld [vmem:[#allocation7 + $0x170] sm:$0xff]
        %v313 = vld [vmem:[#allocation7 + $0x178] sm:$0xf]
        %v314 = vld [vmem:[#allocation7 + $0x17c] sm:$0xff]
        %v315 = vld [vmem:[#allocation7 + $0x184] sm:$0xff]
        %v316 = vld [vmem:[#allocation7 + $0x18c] sm:$0xf]
        %v317 = vld [vmem:[#allocation7 + $0x190] sm:$0xff]
        %v318 = vld [vmem:[#allocation7 + $0x198] sm:$0xff]
        %v319 = vld [vmem:[#allocation7 + $0x1a0] sm:$0xf]
        %v320 = vld [vmem:[#allocation7 + $0x1a4] sm:$0xff]
        %v321 = vld [vmem:[#allocation7 + $0x1ac] sm:$0xff]
        %v322 = vld [vmem:[#allocation7 + $0x1b4] sm:$0xf]
        %v323 = vld [vmem:[#allocation7 + $0x1b8] sm:$0xff]
        %v324 = vld [vmem:[#allocation7 + $0x1c0] sm:$0xff]
        %v325 = vld [vmem:[#allocation7 + $0x1c8] sm:$0xf]
        %v326 = vld [vmem:[#allocation7 + $0x1cc] sm:$0xff]
        %v327 = vld [vmem:[#allocation7 + $0x1d4] sm:$0xff]
        %v328 = vld [vmem:[#allocation7 + $0x1dc] sm:$0xf]
        %v333 = vunpack.c.l.b16 %v253
        %v334 = vunpack.c.l.b16 %v254
        %v335 = vunpack.c.l.b16 %v255
        %v336 = vunpack.c.l.b16 %v256
        %v337 = vpack.c.b16 %v335, %v333
        %v338 = vpack.c.b16 %v336, %v334
        %v412 = vunpack.c.l.b16 %v257
        %v413 = vunpack.c.h.b16 %v257
        %v414 = vunpack.c.l.b16 %v258
        %v415 = vunpack.c.h.b16 %v258
        %v416 = vunpack.c.l.b16 %v259
        %v417 = vunpack.c.l.b16 %v260
        %v418 = vunpack.c.h.b16 %v260
        %v419 = vunpack.c.l.b16 %v261
        %v420 = vunpack.c.h.b16 %v261
        %v421 = vunpack.c.l.b16 %v262
        %v422 = vunpack.c.l.b16 %v263
        %v423 = vunpack.c.h.b16 %v263
        %v424 = vunpack.c.l.b16 %v264
        %v425 = vunpack.c.h.b16 %v264
        %v426 = vunpack.c.l.b16 %v265
        %v427 = vunpack.c.l.b16 %v266
        %v428 = vunpack.c.h.b16 %v266
        %v429 = vunpack.c.l.b16 %v267
        %v430 = vunpack.c.h.b16 %v267
        %v431 = vunpack.c.l.b16 %v268
        %v432 = vunpack.c.l.b16 %v269
        %v433 = vunpack.c.h.b16 %v269
        %v434 = vunpack.c.l.b16 %v270
        %v435 = vunpack.c.h.b16 %v270
        %v436 = vunpack.c.l.b16 %v271
        %v437 = vunpack.c.l.b16 %v272
        %v438 = vunpack.c.h.b16 %v272
        %v439 = vunpack.c.l.b16 %v273
        %v440 = vunpack.c.h.b16 %v273
        %v441 = vunpack.c.l.b16 %v274
        %v442 = vunpack.c.l.b16 %v275
        %v443 = vunpack.c.h.b16 %v275
        %v444 = vunpack.c.l.b16 %v276
        %v445 = vunpack.c.h.b16 %v276
        %v446 = vunpack.c.l.b16 %v277
        %v447 = vunpack.c.l.b16 %v278
        %v448 = vunpack.c.h.b16 %v278
        %v449 = vunpack.c.l.b16 %v279
        %v450 = vunpack.c.h.b16 %v279
        %v451 = vunpack.c.l.b16 %v280
        %v452 = vunpack.c.l.b16 %v281
        %v453 = vunpack.c.h.b16 %v281
        %v454 = vunpack.c.l.b16 %v282
        %v455 = vunpack.c.h.b16 %v282
        %v456 = vunpack.c.l.b16 %v283
        %v457 = vunpack.c.l.b16 %v284
        %v458 = vunpack.c.h.b16 %v284
        %v459 = vunpack.c.l.b16 %v285
        %v460 = vunpack.c.h.b16 %v285
        %v461 = vunpack.c.l.b16 %v286
        %v462 = vunpack.c.l.b16 %v287
        %v463 = vunpack.c.h.b16 %v287
        %v464 = vunpack.c.l.b16 %v288
        %v465 = vunpack.c.h.b16 %v288
        %v466 = vunpack.c.l.b16 %v289
        %v467 = vunpack.c.l.b16 %v290
        %v468 = vunpack.c.h.b16 %v290
        %v469 = vunpack.c.l.b16 %v291
        %v470 = vunpack.c.h.b16 %v291
        %v471 = vunpack.c.l.b16 %v292
        %v472 = vunpack.c.l.b16 %v293
        %v473 = vunpack.c.h.b16 %v293
        %v474 = vunpack.c.l.b16 %v294
        %v475 = vunpack.c.h.b16 %v294
        %v476 = vunpack.c.l.b16 %v295
        %v477 = vunpack.c.l.b16 %v296
        %v478 = vunpack.c.h.b16 %v296
        %v479 = vunpack.c.l.b16 %v297
        %v480 = vunpack.c.h.b16 %v297
        %v481 = vunpack.c.l.b16 %v298
        %v482 = vunpack.c.l.b16 %v299
        %v483 = vunpack.c.h.b16 %v299
        %v484 = vunpack.c.l.b16 %v300
        %v485 = vunpack.c.h.b16 %v300
        %v486 = vunpack.c.l.b16 %v301
        %v487 = vunpack.c.l.b16 %v302
        %v488 = vunpack.c.h.b16 %v302
        %v489 = vunpack.c.l.b16 %v303
        %v490 = vunpack.c.h.b16 %v303
        %v491 = vunpack.c.l.b16 %v304
        %v492 = vunpack.c.l.b16 %v305
        %v493 = vunpack.c.h.b16 %v305
        %v494 = vunpack.c.l.b16 %v306
        %v495 = vunpack.c.h.b16 %v306
        %v496 = vunpack.c.l.b16 %v307
        %v497 = vunpack.c.l.b16 %v308
        %v498 = vunpack.c.h.b16 %v308
        %v499 = vunpack.c.l.b16 %v309
        %v500 = vunpack.c.h.b16 %v309
        %v501 = vunpack.c.l.b16 %v310
        %v502 = vunpack.c.l.b16 %v311
        %v503 = vunpack.c.h.b16 %v311
        %v504 = vunpack.c.l.b16 %v312
        %v505 = vunpack.c.h.b16 %v312
        %v506 = vunpack.c.l.b16 %v313
        %v507 = vunpack.c.l.b16 %v314
        %v508 = vunpack.c.h.b16 %v314
        %v509 = vunpack.c.l.b16 %v315
        %v510 = vunpack.c.h.b16 %v315
        %v511 = vunpack.c.l.b16 %v316
        %v512 = vunpack.c.l.b16 %v317
        %v513 = vunpack.c.h.b16 %v317
        %v514 = vunpack.c.l.b16 %v318
        %v515 = vunpack.c.h.b16 %v318
        %v516 = vunpack.c.l.b16 %v319
        %v517 = vunpack.c.l.b16 %v320
        %v518 = vunpack.c.h.b16 %v320
        %v519 = vunpack.c.l.b16 %v321
        %v520 = vunpack.c.h.b16 %v321
        %v521 = vunpack.c.l.b16 %v322
        %v522 = vunpack.c.l.b16 %v323
        %v523 = vunpack.c.h.b16 %v323
        %v524 = vunpack.c.l.b16 %v324
        %v525 = vunpack.c.h.b16 %v324
        %v526 = vunpack.c.l.b16 %v325
        %v527 = vunpack.c.l.b16 %v326
        %v528 = vunpack.c.h.b16 %v326
        %v529 = vunpack.c.l.b16 %v327
        %v530 = vunpack.c.h.b16 %v327
        %v531 = vunpack.c.l.b16 %v328
        %v532 = vpack.c.b16 %v417, %v412
        %v533 = vpack.c.b16 %v418, %v413
        %v534 = vpack.c.b16 %v419, %v414
        %v535 = vpack.c.b16 %v420, %v415
        %v536 = vpack.c.b16 %v421, %v416
        %v537 = vpack.c.b16 %v427, %v422
        %v538 = vpack.c.b16 %v428, %v423
        %v539 = vpack.c.b16 %v429, %v424
        %v540 = vpack.c.b16 %v430, %v425
        %v541 = vpack.c.b16 %v431, %v426
        %v542 = vpack.c.b16 %v437, %v432
        %v543 = vpack.c.b16 %v438, %v433
        %v544 = vpack.c.b16 %v439, %v434
        %v545 = vpack.c.b16 %v440, %v435
        %v546 = vpack.c.b16 %v441, %v436
        %v547 = vpack.c.b16 %v447, %v442
        %v548 = vpack.c.b16 %v448, %v443
        %v549 = vpack.c.b16 %v449, %v444
        %v550 = vpack.c.b16 %v450, %v445
        %v551 = vpack.c.b16 %v451, %v446
        %v552 = vpack.c.b16 %v457, %v452
        %v553 = vpack.c.b16 %v458, %v453
        %v554 = vpack.c.b16 %v459, %v454
        %v555 = vpack.c.b16 %v460, %v455
        %v556 = vpack.c.b16 %v461, %v456
        %v557 = vpack.c.b16 %v467, %v462
        %v558 = vpack.c.b16 %v468, %v463
        %v559 = vpack.c.b16 %v469, %v464
        %v560 = vpack.c.b16 %v470, %v465
        %v561 = vpack.c.b16 %v471, %v466
        %v562 = vpack.c.b16 %v477, %v472
        %v563 = vpack.c.b16 %v478, %v473
        %v564 = vpack.c.b16 %v479, %v474
        %v565 = vpack.c.b16 %v480, %v475
        %v566 = vpack.c.b16 %v481, %v476
        %v567 = vpack.c.b16 %v487, %v482
        %v568 = vpack.c.b16 %v488, %v483
        %v569 = vpack.c.b16 %v489, %v484
        %v570 = vpack.c.b16 %v490, %v485
        %v571 = vpack.c.b16 %v491, %v486
        %v572 = vpack.c.b16 %v497, %v492
        %v573 = vpack.c.b16 %v498, %v493
        %v574 = vpack.c.b16 %v499, %v494
        %v575 = vpack.c.b16 %v500, %v495
        %v576 = vpack.c.b16 %v501, %v496
        %v577 = vpack.c.b16 %v507, %v502
        %v578 = vpack.c.b16 %v508, %v503
        %v579 = vpack.c.b16 %v509, %v504
        %v580 = vpack.c.b16 %v510, %v505
        %v581 = vpack.c.b16 %v511, %v506
        %v582 = vpack.c.b16 %v517, %v512
        %v583 = vpack.c.b16 %v518, %v513
        %v584 = vpack.c.b16 %v519, %v514
        %v585 = vpack.c.b16 %v520, %v515
        %v586 = vpack.c.b16 %v521, %v516
        %v587 = vpack.c.b16 %v527, %v522
        %v588 = vpack.c.b16 %v528, %v523
        %v589 = vpack.c.b16 %v529, %v524
        %v590 = vpack.c.b16 %v530, %v525
        %v591 = vpack.c.b16 %v531, %v526
        %vm652 = vcmask 523264
        %v654 = vsel %vm652, %v338, 0
        %656 = vmatprep.subr.bf16.mxu0 %v533
        %657 = vmatpush1.bf16.msra.mxu0 %v532
        %658 = vmatprep.subr.bf16.mxu0 %v538
        %659 = vmatpush1.bf16.msra.mxu0 %v537
        %660 = vmatprep.subr.bf16.mxu0 %v543
        %661 = vmatpush1.bf16.msra.mxu0 %v542
        %662 = vmatprep.subr.bf16.mxu0 %v548
        %663 = vmatpush1.bf16.msra.mxu0 %v547
        %664 = vmatprep.subr.bf16.mxu0 %v553
        %665 = vmatpush1.bf16.msra.mxu0 %v552
        %666 = vmatprep.subr.bf16.mxu0 %v558
        %667 = vmatpush1.bf16.msra.mxu0 %v557
        %668 = vmatprep.subr.bf16.mxu0 %v563
        %669 = vmatpush1.bf16.msra.mxu0 %v562
        %670 = vmatprep.subr.bf16.mxu0 %v568
        %671 = vmatpush1.bf16.msra.mxu0 %v567
        %672 = vmatprep.subr.bf16.mxu0 %v573
        %673 = vmatpush1.bf16.msra.mxu0 %v572
        %674 = vmatprep.subr.bf16.mxu0 %v578
        %675 = vmatpush1.bf16.msra.mxu0 %v577
        %676 = vmatprep.subr.bf16.mxu0 %v583
        %677 = vmatpush1.bf16.msra.mxu0 %v582
        %678 = vmatprep.subr.bf16.mxu0 %v588
        %679 = vmatpush1.bf16.msra.mxu0 %v587
        %680 = vmatprep.subr.bf16.mxu0 0
        %681 = vmatpush1.bf16.msra.mxu0 0
        %682 = vmatprep.subr.bf16.mxu0 0
        %683 = vmatpush1.bf16.msra.mxu0 0
        %684 = vmatprep.subr.bf16.mxu0 0
        %685 = vmatpush1.bf16.msra.mxu0 0
        %686 = vmatprep.subr.bf16.mxu0 0
        %687 = vmatpush1.bf16.msra.mxu0 0
        %688 = vmatprep.mubr.bf16.mxu0 %v654
        %689 = vmatmul.mubr.bf16.gmra.mrb[0].mxu0 %v337
        %v690 = vpop.f32.mrb[0].mxu0
        %v691 = vadd.f32 0.0, %v690
        %v692 = vpop.f32.mrb[0].mxu0
        %v693 = vadd.f32 0.0, %v692
        %v694 = vpop.f32.mrb[0].mxu0
        %v695 = vadd.f32 0.0, %v694
        %v696 = vpop.f32.mrb[0].mxu0
        %v697 = vadd.f32 0.0, %v696
        %698 = vdwg.mxu0
        %699 = vmatprep.subr.bf16.mxu0 %v535
        %700 = vmatpush1.bf16.msra.mxu0 %v534
        %701 = vmatprep.subr.bf16.mxu0 %v540
        %702 = vmatpush1.bf16.msra.mxu0 %v539
        %703 = vmatprep.subr.bf16.mxu0 %v545
        %704 = vmatpush1.bf16.msra.mxu0 %v544
        %705 = vmatprep.subr.bf16.mxu0 %v550
        %706 = vmatpush1.bf16.msra.mxu0 %v549
        %707 = vmatprep.subr.bf16.mxu0 %v555
        %708 = vmatpush1.bf16.msra.mxu0 %v554
        %709 = vmatprep.subr.bf16.mxu0 %v560
        %710 = vmatpush1.bf16.msra.mxu0 %v559
        %711 = vmatprep.subr.bf16.mxu0 %v565
        %712 = vmatpush1.bf16.msra.mxu0 %v564
        %713 = vmatprep.subr.bf16.mxu0 %v570
        %714 = vmatpush1.bf16.msra.mxu0 %v569
        %715 = vmatprep.subr.bf16.mxu0 %v575
        %716 = vmatpush1.bf16.msra.mxu0 %v574
        %717 = vmatprep.subr.bf16.mxu0 %v580
        %718 = vmatpush1.bf16.msra.mxu0 %v579
        %719 = vmatprep.subr.bf16.mxu0 %v585
        %720 = vmatpush1.bf16.msra.mxu0 %v584
        %721 = vmatprep.subr.bf16.mxu0 %v590
        %722 = vmatpush1.bf16.msra.mxu0 %v589
        %723 = vmatprep.subr.bf16.mxu0 0
        %724 = vmatpush1.bf16.msra.mxu0 0
        %725 = vmatprep.subr.bf16.mxu0 0
        %726 = vmatpush1.bf16.msra.mxu0 0
        %727 = vmatprep.subr.bf16.mxu0 0
        %728 = vmatpush1.bf16.msra.mxu0 0
        %729 = vmatprep.subr.bf16.mxu0 0
        %730 = vmatpush1.bf16.msra.mxu0 0
        %731 = vmatprep.mubr.bf16.mxu0 %v654
        %732 = vmatmul.mubr.bf16.gmra.mrb[0].mxu0 %v337
        %v733 = vpop.f32.mrb[0].mxu0
        %v734 = vadd.f32 0.0, %v733
        %v735 = vpop.f32.mrb[0].mxu0
        %v736 = vadd.f32 0.0, %v735
        %v737 = vpop.f32.mrb[0].mxu0
        %v738 = vadd.f32 0.0, %v737
        %v739 = vpop.f32.mrb[0].mxu0
        %v740 = vadd.f32 0.0, %v739
        %741 = vdwg.mxu0
        %742 = vmatprep.subr.bf16.mxu0 0
        %743 = vmatpush1.bf16.msra.mxu0 %v536
        %744 = vmatprep.subr.bf16.mxu0 0
        %745 = vmatpush1.bf16.msra.mxu0 %v541
        %746 = vmatprep.subr.bf16.mxu0 0
        %747 = vmatpush1.bf16.msra.mxu0 %v546
        %748 = vmatprep.subr.bf16.mxu0 0
        %749 = vmatpush1.bf16.msra.mxu0 %v551
        %750 = vmatprep.subr.bf16.mxu0 0
        %751 = vmatpush1.bf16.msra.mxu0 %v556
        %752 = vmatprep.subr.bf16.mxu0 0
        %753 = vmatpush1.bf16.msra.mxu0 %v561
        %754 = vmatprep.subr.bf16.mxu0 0
        %755 = vmatpush1.bf16.msra.mxu0 %v566
        %756 = vmatprep.subr.bf16.mxu0 0
        %757 = vmatpush1.bf16.msra.mxu0 %v571
        %758 = vmatprep.subr.bf16.mxu0 0
        %759 = vmatpush1.bf16.msra.mxu0 %v576
        %760 = vmatprep.subr.bf16.mxu0 0
        %761 = vmatpush1.bf16.msra.mxu0 %v581
        %762 = vmatprep.subr.bf16.mxu0 0
        %763 = vmatpush1.bf16.msra.mxu0 %v586
        %764 = vmatprep.subr.bf16.mxu0 0
        %765 = vmatpush1.bf16.msra.mxu0 %v591
        %766 = vmatprep.subr.bf16.mxu0 0
        %767 = vmatpush1.bf16.msra.mxu0 0
        %768 = vmatprep.subr.bf16.mxu0 0
        %769 = vmatpush1.bf16.msra.mxu0 0
        %770 = vmatprep.subr.bf16.mxu0 0
        %771 = vmatpush1.bf16.msra.mxu0 0
        %772 = vmatprep.subr.bf16.mxu0 0
        %773 = vmatpush1.bf16.msra.mxu0 0
        %774 = vmatprep.mubr.bf16.mxu0 %v654
        %775 = vmatmul.mubr.bf16.gmra.mrb[0].mxu0 %v337
        %v776 = vpop.f32.mrb[0].mxu0
        %v777 = vadd.f32 0.0, %v776
        %v778 = vpop.f32.mrb[0].mxu0
        %v779 = vpop.f32.mrb[0].mxu0
        %v780 = vadd.f32 0.0, %v779
        %v781 = vpop.f32.mrb[0].mxu0
        %782 = vdwg.mxu0
        %v783 = vpack.c.bf16 %v691, %v691
        %v784 = vpack.c.bf16 %v693, %v693
        %v785 = vpack.c.bf16 %v734, %v734
        %v786 = vpack.c.bf16 %v736, %v736
        %v787 = vpack.c.bf16 %v777, %v777
        %v788 = vpack.c.bf16 %v695, %v695
        %v789 = vpack.c.bf16 %v697, %v697
        %v790 = vpack.c.bf16 %v738, %v738
        %v791 = vpack.c.bf16 %v740, %v740
        %v792 = vpack.c.bf16 %v780, %v780
        %v803 = vunpack.c.l.b16 %v783
        %v804 = vunpack.c.l.b16 %v784
        %v805 = vunpack.c.l.b16 %v785
        %v806 = vunpack.c.l.b16 %v786
        %v807 = vunpack.c.l.b16 %v787
        %v808 = vunpack.c.l.b16 %v788
        %v809 = vunpack.c.l.b16 %v789
        %v810 = vunpack.c.l.b16 %v790
        %v811 = vunpack.c.l.b16 %v791
        %v812 = vunpack.c.l.b16 %v792
        %v813 = vpack.c.b16 %v804, %v803
        %v814 = vpack.c.b16 %v806, %v805
        %v815 = vpack.c.b16 %v807, %v807
        %v816 = vpack.c.b16 %v809, %v808
        %v817 = vpack.c.b16 %v811, %v810
        %v818 = vpack.c.b16 %v812, %v812
        %825 = vst [vmem:[#allocation2] sm:$0xff] %v813
        %826 = vst [vmem:[#allocation2 + $0x8] sm:$0xff] %v814
        %vm827 = vcmask 519168
        %828 = vst.msk [vmem:[#allocation2 + $0x10] sm:$0xf] %vm827, %v815
        %829 = vst [vmem:[#allocation2 + $0x14] sm:$0xff] %v816
        %830 = vst [vmem:[#allocation2 + $0x1c] sm:$0xff] %v817
        %831 = vst.msk [vmem:[#allocation2 + $0x24] sm:$0xf] %vm827, %v818
        %v832 = vlaneseq
        %v833 = vshrl.u32 %v832, 7
        %v834 = vlaneseq
        %v835 = vand.u32 %v834, 127
        %vm836 = vcmp.le.s32.totalorder %v835, %v833
        %v837 = vsel %vm836, 0.0, -1e+30
        %v838 = vld [vmem:[#allocation2] sm:$0xf]
        %v839 = vld [vmem:[#allocation2 + $0x14] sm:$0xf]
        %v840 = vld [vmem:[#allocation2 + $0x4] sm:$0xf]
        %v841 = vld [vmem:[#allocation2 + $0x18] sm:$0xf]
        %v842 = vld [vmem:[#allocation2 + $0xc] sm:$0xf]
        %v843 = vld [vmem:[#allocation2 + $0x20] sm:$0xf]
        %v845 = vunpack.c.l.b16 %v840
        %v846 = vpack.c.b16 %v845, %v845
        %847 = vrot.lane.b32.xlu0 %v846, 64
        %v848 = vpop.permute.xlu0 %847
        %vm849 = vcmask 261120
        %v851 = vsel %vm849, %v838, 0
        %v854 = vsel %vm849, %v848, 0
        %856 = vmatprep.subr.bf16.mxu0 0
        %857 = vmatpush1.bf16.xpose.msra.mxu0 %v854
        %858 = vmatprep.subr.bf16.mxu0 0
        %859 = vmatpush1.bf16.xpose.msra.mxu0 0
        %860 = vmatprep.subr.bf16.mxu0 0
        %861 = vmatpush1.bf16.xpose.msra.mxu0 0
        %862 = vmatprep.subr.bf16.mxu0 0
        %863 = vmatpush1.bf16.xpose.msra.mxu0 0
        %864 = vmatprep.subr.bf16.mxu0 0
        %865 = vmatpush1.bf16.xpose.msra.mxu0 0
        %866 = vmatprep.subr.bf16.mxu0 0
        %867 = vmatpush1.bf16.xpose.msra.mxu0 0
        %868 = vmatprep.subr.bf16.mxu0 0
        %869 = vmatpush1.bf16.xpose.msra.mxu0 0
        %870 = vmatprep.subr.bf16.mxu0 0
        %871 = vmatpush1.bf16.xpose.msra.mxu0 0
        %872 = vmatprep.subr.bf16.mxu0 0
        %873 = vmatpush1.bf16.xpose.msra.mxu0 0
        %874 = vmatprep.subr.bf16.mxu0 0
        %875 = vmatpush1.bf16.xpose.msra.mxu0 0
        %876 = vmatprep.subr.bf16.mxu0 0
        %877 = vmatpush1.bf16.xpose.msra.mxu0 0
        %878 = vmatprep.subr.bf16.mxu0 0
        %879 = vmatpush1.bf16.xpose.msra.mxu0 0
        %880 = vmatprep.subr.bf16.mxu0 0
        %881 = vmatpush1.bf16.xpose.msra.mxu0 0
        %882 = vmatprep.subr.bf16.mxu0 0
        %883 = vmatpush1.bf16.xpose.msra.mxu0 0
        %884 = vmatprep.subr.bf16.mxu0 0
        %885 = vmatpush1.bf16.xpose.msra.mxu0 0
        %886 = vmatprep.subr.bf16.mxu0 0
        %887 = vmatpush1.bf16.xpose.msra.mxu0 0
        %888 = vmatprep.mubr.bf16.mxu0 0
        %889 = vmatmul.mubr.bf16.gmra.mrb[0].mxu0 %v851
        %v890 = vpop.f32.mrb[0].mxu0
        %v891 = vadd.f32 %v837, %v890
        %v892 = vpop.f32.mrb[0].mxu0
        %v893 = vpop.f32.mrb[0].mxu0
        %v894 = vpop.f32.mrb[0].mxu0
        %895 = vdwg.mxu0
        %v897 = vunpack.c.l.b16 %v841
        %v898 = vpack.c.b16 %v897, %v897
        %899 = vrot.lane.b32.xlu0 %v898, 64
        %v900 = vpop.permute.xlu0 %899
        %v902 = vsel %vm849, %v839, 0
        %v905 = vsel %vm849, %v900, 0
        %907 = vmatprep.subr.bf16.mxu0 0
        %908 = vmatpush1.bf16.xpose.msra.mxu0 %v905
        %909 = vmatprep.subr.bf16.mxu0 0
        %910 = vmatpush1.bf16.xpose.msra.mxu0 0
        %911 = vmatprep.subr.bf16.mxu0 0
        %912 = vmatpush1.bf16.xpose.msra.mxu0 0
        %913 = vmatprep.subr.bf16.mxu0 0
        %914 = vmatpush1.bf16.xpose.msra.mxu0 0
        %915 = vmatprep.subr.bf16.mxu0 0
        %916 = vmatpush1.bf16.xpose.msra.mxu0 0
        %917 = vmatprep.subr.bf16.mxu0 0
        %918 = vmatpush1.bf16.xpose.msra.mxu0 0
        %919 = vmatprep.subr.bf16.mxu0 0
        %920 = vmatpush1.bf16.xpose.msra.mxu0 0
        %921 = vmatprep.subr.bf16.mxu0 0
        %922 = vmatpush1.bf16.xpose.msra.mxu0 0
        %923 = vmatprep.subr.bf16.mxu0 0
        %924 = vmatpush1.bf16.xpose.msra.mxu0 0
        %925 = vmatprep.subr.bf16.mxu0 0
        %926 = vmatpush1.bf16.xpose.msra.mxu0 0
        %927 = vmatprep.subr.bf16.mxu0 0
        %928 = vmatpush1.bf16.xpose.msra.mxu0 0
        %929 = vmatprep.subr.bf16.mxu0 0
        %930 = vmatpush1.bf16.xpose.msra.mxu0 0
        %931 = vmatprep.subr.bf16.mxu0 0
        %932 = vmatpush1.bf16.xpose.msra.mxu0 0
        %933 = vmatprep.subr.bf16.mxu0 0
        %934 = vmatpush1.bf16.xpose.msra.mxu0 0
        %935 = vmatprep.subr.bf16.mxu0 0
        %936 = vmatpush1.bf16.xpose.msra.mxu0 0
        %937 = vmatprep.subr.bf16.mxu0 0
        %938 = vmatpush1.bf16.xpose.msra.mxu0 0
        %939 = vmatprep.mubr.bf16.mxu0 0
        %940 = vmatmul.mubr.bf16.gmra.mrb[0].mxu0 %v902
        %v941 = vpop.f32.mrb[0].mxu0
        %v942 = vadd.f32 %v837, %v941
        %v943 = vpop.f32.mrb[0].mxu0
        %v944 = vpop.f32.mrb[0].mxu0
        %v945 = vpop.f32.mrb[0].mxu0
        %946 = vdwg.mxu0
        %vm947 = vcmask 64512
        %v948 = vsel %vm947, %v891, -inf
        %949 = vmax.xlane.f32.xlu0 %v948
        %v950 = vpop.xlane.xlu0 %949
        %v951 = vsel %vm947, %v942, -inf
        %952 = vmax.xlane.f32.xlu0 %v951
        %v953 = vpop.xlane.xlu0 %952
        %v954 = vsub.f32 %v891, %v950
        %v955 = vsub.f32 %v942, %v953
        %v956 = vmul.f32 %v954, 1.442695
        %v957 = vpow.pop %v956
        %v958 = vmul.f32 %v955, 1.442695
        %v959 = vpow.pop %v958
        %v960 = vsel %vm947, %v957, 0.0
        %961 = vadd.xlane.f32.xlu0 %v960
        %v962 = vpop.xlane.xlu0 %961
        %v963 = vsel %vm947, %v959, 0.0
        %964 = vadd.xlane.f32.xlu0 %v963
        %v965 = vpop.xlane.xlu0 %964
        %v966 = vrcp.pop %v962
        %v967 = vrcp.pop %v965
        %v968 = vmul.f32 %v957, %v966
        %v969 = vmul.f32 %v959, %v967
        %v970 = vpack.c.bf16 %v968, %v968
        %v971 = vpack.c.bf16 %v969, %v969
        %v973 = vsel %vm947, %v970, 0
        %vm975 = vcmask 1043456
        %v977 = vsel %vm975, %v842, 0
        %979 = vmatprep.subr.bf16.mxu0 0
        %980 = vmatpush1.bf16.msra.mxu0 %v977
        %981 = vmatprep.subr.bf16.mxu0 0
        %982 = vmatpush1.bf16.msra.mxu0 0
        %983 = vmatprep.subr.bf16.mxu0 0
        %984 = vmatpush1.bf16.msra.mxu0 0
        %985 = vmatprep.subr.bf16.mxu0 0
        %986 = vmatpush1.bf16.msra.mxu0 0
        %987 = vmatprep.subr.bf16.mxu0 0
        %988 = vmatpush1.bf16.msra.mxu0 0
        %989 = vmatprep.subr.bf16.mxu0 0
        %990 = vmatpush1.bf16.msra.mxu0 0
        %991 = vmatprep.subr.bf16.mxu0 0
        %992 = vmatpush1.bf16.msra.mxu0 0
        %993 = vmatprep.subr.bf16.mxu0 0
        %994 = vmatpush1.bf16.msra.mxu0 0
        %995 = vmatprep.subr.bf16.mxu0 0
        %996 = vmatpush1.bf16.msra.mxu0 0
        %997 = vmatprep.subr.bf16.mxu0 0
        %998 = vmatpush1.bf16.msra.mxu0 0
        %999 = vmatprep.subr.bf16.mxu0 0
        %1000 = vmatpush1.bf16.msra.mxu0 0
        %1001 = vmatprep.subr.bf16.mxu0 0
        %1002 = vmatpush1.bf16.msra.mxu0 0
        %1003 = vmatprep.subr.bf16.mxu0 0
        %1004 = vmatpush1.bf16.msra.mxu0 0
        %1005 = vmatprep.subr.bf16.mxu0 0
        %1006 = vmatpush1.bf16.msra.mxu0 0
        %1007 = vmatprep.subr.bf16.mxu0 0
        %1008 = vmatpush1.bf16.msra.mxu0 0
        %1009 = vmatprep.subr.bf16.mxu0 0
        %1010 = vmatpush1.bf16.msra.mxu0 0
        %1011 = vmatprep.mubr.bf16.mxu0 0
        %1012 = vmatmul.mubr.bf16.gmra.mrb[0].mxu0 %v973
        %v1013 = vpop.f32.mrb[0].mxu0
        %v1014 = vadd.f32 0.0, %v1013
        %v1015 = vpop.f32.mrb[0].mxu0
        %v1016 = vpop.f32.mrb[0].mxu0
        %v1017 = vpop.f32.mrb[0].mxu0
        %1018 = vdwg.mxu0
        %v1020 = vsel %vm947, %v971, 0
        %v1023 = vsel %vm975, %v843, 0
        %1025 = vmatprep.subr.bf16.mxu0 0
        %1026 = vmatpush1.bf16.msra.mxu0 %v1023
        %1027 = vmatprep.subr.bf16.mxu0 0
        %1028 = vmatpush1.bf16.msra.mxu0 0
        %1029 = vmatprep.subr.bf16.mxu0 0
        %1030 = vmatpush1.bf16.msra.mxu0 0
        %1031 = vmatprep.subr.bf16.mxu0 0
        %1032 = vmatpush1.bf16.msra.mxu0 0
        %1033 = vmatprep.subr.bf16.mxu0 0
        %1034 = vmatpush1.bf16.msra.mxu0 0
        %1035 = vmatprep.subr.bf16.mxu0 0
        %1036 = vmatpush1.bf16.msra.mxu0 0
        %1037 = vmatprep.subr.bf16.mxu0 0
        %1038 = vmatpush1.bf16.msra.mxu0 0
        %1039 = vmatprep.subr.bf16.mxu0 0
        %1040 = vmatpush1.bf16.msra.mxu0 0
        %1041 = vmatprep.subr.bf16.mxu0 0
        %1042 = vmatpush1.bf16.msra.mxu0 0
        %1043 = vmatprep.subr.bf16.mxu0 0
        %1044 = vmatpush1.bf16.msra.mxu0 0
        %1045 = vmatprep.subr.bf16.mxu0 0
        %1046 = vmatpush1.bf16.msra.mxu0 0
        %1047 = vmatprep.subr.bf16.mxu0 0
        %1048 = vmatpush1.bf16.msra.mxu0 0
        %1049 = vmatprep.subr.bf16.mxu0 0
        %1050 = vmatpush1.bf16.msra.mxu0 0
        %1051 = vmatprep.subr.bf16.mxu0 0
        %1052 = vmatpush1.bf16.msra.mxu0 0
        %1053 = vmatprep.subr.bf16.mxu0 0
        %1054 = vmatpush1.bf16.msra.mxu0 0
        %1055 = vmatprep.subr.bf16.mxu0 0
        %1056 = vmatpush1.bf16.msra.mxu0 0
        %1057 = vmatprep.mubr.bf16.mxu0 0
        %1058 = vmatmul.mubr.bf16.gmra.mrb[0].mxu0 %v1020
        %v1059 = vpop.f32.mrb[0].mxu0
        %v1060 = vadd.f32 0.0, %v1059
        %v1061 = vpop.f32.mrb[0].mxu0
        %v1062 = vpop.f32.mrb[0].mxu0
        %v1063 = vpop.f32.mrb[0].mxu0
        %1064 = vdwg.mxu0
        %v1065 = vpack.c.bf16 %v1014, %v1014
        %v1066 = vpack.c.bf16 %v1060, %v1060
        %vm1067 = vcmask 257024
        %1068 = vst.msk [vmem:[#allocation3] sm:$0xf] %vm1067, %v1065
        %1069 = vst.msk [vmem:[#allocation3 + $0x8] sm:$0xf] %vm1067, %v1066
        %v1070 = vld [vmem:[#allocation2] sm:$0xf]
        %v1071 = vld [vmem:[#allocation2 + $0x14] sm:$0xf]
        %v1072 = vld [vmem:[#allocation2 + $0x4] sm:$0xf]
        %v1073 = vld [vmem:[#allocation2 + $0x18] sm:$0xf]
        %v1074 = vld [vmem:[#allocation2 + $0xc] sm:$0xf]
        %v1075 = vld [vmem:[#allocation2 + $0x20] sm:$0xf]
        %v1077 = vunpack.c.l.b16 %v1070
        %v1078 = vpack.c.b16 %v1077, %v1077
        %1079 = vrot.lane.b32.xlu0 %v1078, 96
        %v1080 = vpop.permute.xlu0 %1079
        %v1082 = vunpack.c.l.b16 %v1072
        %v1083 = vpack.c.b16 %v1082, %v1082
        %1084 = vrot.lane.b32.xlu0 %v1083, 32
        %v1085 = vpop.permute.xlu0 %1084
        %v1087 = vsel %vm849, %v1080, 0
        %v1090 = vsel %vm849, %v1085, 0
        %1092 = vmatprep.subr.bf16.mxu0 0
        %1093 = vmatpush1.bf16.xpose.msra.mxu0 %v1090
        %1094 = vmatprep.subr.bf16.mxu0 0
        %1095 = vmatpush1.bf16.xpose.msra.mxu0 0
        %1096 = vmatprep.subr.bf16.mxu0 0
        %1097 = vmatpush1.bf16.xpose.msra.mxu0 0
        %1098 = vmatprep.subr.bf16.mxu0 0
        %1099 = vmatpush1.bf16.xpose.msra.mxu0 0
        %1100 = vmatprep.subr.bf16.mxu0 0
        %1101 = vmatpush1.bf16.xpose.msra.mxu0 0
        %1102 = vmatprep.subr.bf16.mxu0 0
        %1103 = vmatpush1.bf16.xpose.msra.mxu0 0
        %1104 = vmatprep.subr.bf16.mxu0 0
        %1105 = vmatpush1.bf16.xpose.msra.mxu0 0
        %1106 = vmatprep.subr.bf16.mxu0 0
        %1107 = vmatpush1.bf16.xpose.msra.mxu0 0
        %1108 = vmatprep.subr.bf16.mxu0 0
        %1109 = vmatpush1.bf16.xpose.msra.mxu0 0
        %1110 = vmatprep.subr.bf16.mxu0 0
        %1111 = vmatpush1.bf16.xpose.msra.mxu0 0
        %1112 = vmatprep.subr.bf16.mxu0 0
        %1113 = vmatpush1.bf16.xpose.msra.mxu0 0
        %1114 = vmatprep.subr.bf16.mxu0 0
        %1115 = vmatpush1.bf16.xpose.msra.mxu0 0
        %1116 = vmatprep.subr.bf16.mxu0 0
        %1117 = vmatpush1.bf16.xpose.msra.mxu0 0
        %1118 = vmatprep.subr.bf16.mxu0 0
        %1119 = vmatpush1.bf16.xpose.msra.mxu0 0
        %1120 = vmatprep.subr.bf16.mxu0 0
        %1121 = vmatpush1.bf16.xpose.msra.mxu0 0
        %1122 = vmatprep.subr.bf16.mxu0 0
        %1123 = vmatpush1.bf16.xpose.msra.mxu0 0
        %1124 = vmatprep.mubr.bf16.mxu0 0
        %1125 = vmatmul.mubr.bf16.gmra.mrb[0].mxu0 %v1087
        %v1126 = vpop.f32.mrb[0].mxu0
        %v1127 = vadd.f32 %v837, %v1126
        %v1128 = vpop.f32.mrb[0].mxu0
        %v1129 = vpop.f32.mrb[0].mxu0
        %v1130 = vpop.f32.mrb[0].mxu0
        %1131 = vdwg.mxu0
        %v1133 = vunpack.c.l.b16 %v1071
        %v1134 = vpack.c.b16 %v1133, %v1133
        %1135 = vrot.lane.b32.xlu0 %v1134, 96
        %v1136 = vpop.permute.xlu0 %1135
        %v1138 = vunpack.c.l.b16 %v1073
        %v1139 = vpack.c.b16 %v1138, %v1138
        %1140 = vrot.lane.b32.xlu0 %v1139, 32
        %v1141 = vpop.permute.xlu0 %1140
        %v1143 = vsel %vm849, %v1136, 0
        %v1146 = vsel %vm849, %v1141, 0
        %1148 = vmatprep.subr.bf16.mxu0 0
        %1149 = vmatpush1.bf16.xpose.msra.mxu0 %v1146
        %1150 = vmatprep.subr.bf16.mxu0 0
        %1151 = vmatpush1.bf16.xpose.msra.mxu0 0
        %1152 = vmatprep.subr.bf16.mxu0 0
        %1153 = vmatpush1.bf16.xpose.msra.mxu0 0
        %1154 = vmatprep.subr.bf16.mxu0 0
        %1155 = vmatpush1.bf16.xpose.msra.mxu0 0
        %1156 = vmatprep.subr.bf16.mxu0 0
        %1157 = vmatpush1.bf16.xpose.msra.mxu0 0
        %1158 = vmatprep.subr.bf16.mxu0 0
        %1159 = vmatpush1.bf16.xpose.msra.mxu0 0
        %1160 = vmatprep.subr.bf16.mxu0 0
        %1161 = vmatpush1.bf16.xpose.msra.mxu0 0
        %1162 = vmatprep.subr.bf16.mxu0 0
        %1163 = vmatpush1.bf16.xpose.msra.mxu0 0
        %1164 = vmatprep.subr.bf16.mxu0 0
        %1165 = vmatpush1.bf16.xpose.msra.mxu0 0
        %1166 = vmatprep.subr.bf16.mxu0 0
        %1167 = vmatpush1.bf16.xpose.msra.mxu0 0
        %1168 = vmatprep.subr.bf16.mxu0 0
        %1169 = vmatpush1.bf16.xpose.msra.mxu0 0
        %1170 = vmatprep.subr.bf16.mxu0 0
        %1171 = vmatpush1.bf16.xpose.msra.mxu0 0
        %1172 = vmatprep.subr.bf16.mxu0 0
        %1173 = vmatpush1.bf16.xpose.msra.mxu0 0
        %1174 = vmatprep.subr.bf16.mxu0 0
        %1175 = vmatpush1.bf16.xpose.msra.mxu0 0
        %1176 = vmatprep.subr.bf16.mxu0 0
        %1177 = vmatpush1.bf16.xpose.msra.mxu0 0
        %1178 = vmatprep.subr.bf16.mxu0 0
        %1179 = vmatpush1.bf16.xpose.msra.mxu0 0
        %1180 = vmatprep.mubr.bf16.mxu0 0
        %1181 = vmatmul.mubr.bf16.gmra.mrb[0].mxu0 %v1143
        %v1182 = vpop.f32.mrb[0].mxu0
        %v1183 = vadd.f32 %v837, %v1182
        %v1184 = vpop.f32.mrb[0].mxu0
        %v1185 = vpop.f32.mrb[0].mxu0
        %v1186 = vpop.f32.mrb[0].mxu0
        %1187 = vdwg.mxu0
        %v1188 = vsel %vm947, %v1127, -inf
        %1189 = vmax.xlane.f32.xlu0 %v1188
        %v1190 = vpop.xlane.xlu0 %1189
        %v1191 = vsel %vm947, %v1183, -inf
        %1192 = vmax.xlane.f32.xlu0 %v1191
        %v1193 = vpop.xlane.xlu0 %1192
        %v1194 = vsub.f32 %v1127, %v1190
        %v1195 = vsub.f32 %v1183, %v1193
        %v1196 = vmul.f32 %v1194, 1.442695
        %v1197 = vpow.pop %v1196
        %v1198 = vmul.f32 %v1195, 1.442695
        %v1199 = vpow.pop %v1198
        %v1200 = vsel %vm947, %v1197, 0.0
        %1201 = vadd.xlane.f32.xlu0 %v1200
        %v1202 = vpop.xlane.xlu0 %1201
        %v1203 = vsel %vm947, %v1199, 0.0
        %1204 = vadd.xlane.f32.xlu0 %v1203
        %v1205 = vpop.xlane.xlu0 %1204
        %v1206 = vrcp.pop %v1202
        %v1207 = vrcp.pop %v1205
        %v1208 = vmul.f32 %v1197, %v1206
        %v1209 = vmul.f32 %v1199, %v1207
        %v1210 = vpack.c.bf16 %v1208, %v1208
        %v1211 = vpack.c.bf16 %v1209, %v1209
        %v1213 = vunpack.c.l.b16 %v1074
        %v1214 = vpack.c.b16 %v1213, %v1213
        %1215 = vrot.lane.b32.xlu0 %v1214, 96
        %v1216 = vpop.permute.xlu0 %1215
        %v1218 = vsel %vm947, %v1210, 0
        %v1221 = vsel %vm975, %v1216, 0
        %1223 = vmatprep.subr.bf16.mxu0 0
        %1224 = vmatpush1.bf16.msra.mxu0 %v1221
        %1225 = vmatprep.subr.bf16.mxu0 0
        %1226 = vmatpush1.bf16.msra.mxu0 0
        %1227 = vmatprep.subr.bf16.mxu0 0
        %1228 = vmatpush1.bf16.msra.mxu0 0
        %1229 = vmatprep.subr.bf16.mxu0 0
        %1230 = vmatpush1.bf16.msra.mxu0 0
        %1231 = vmatprep.subr.bf16.mxu0 0
        %1232 = vmatpush1.bf16.msra.mxu0 0
        %1233 = vmatprep.subr.bf16.mxu0 0
        %1234 = vmatpush1.bf16.msra.mxu0 0
        %1235 = vmatprep.subr.bf16.mxu0 0
        %1236 = vmatpush1.bf16.msra.mxu0 0
        %1237 = vmatprep.subr.bf16.mxu0 0
        %1238 = vmatpush1.bf16.msra.mxu0 0
        %1239 = vmatprep.subr.bf16.mxu0 0
        %1240 = vmatpush1.bf16.msra.mxu0 0
        %1241 = vmatprep.subr.bf16.mxu0 0
        %1242 = vmatpush1.bf16.msra.mxu0 0
        %1243 = vmatprep.subr.bf16.mxu0 0
        %1244 = vmatpush1.bf16.msra.mxu0 0
        %1245 = vmatprep.subr.bf16.mxu0 0
        %1246 = vmatpush1.bf16.msra.mxu0 0
        %1247 = vmatprep.subr.bf16.mxu0 0
        %1248 = vmatpush1.bf16.msra.mxu0 0
        %1249 = vmatprep.subr.bf16.mxu0 0
        %1250 = vmatpush1.bf16.msra.mxu0 0
        %1251 = vmatprep.subr.bf16.mxu0 0
        %1252 = vmatpush1.bf16.msra.mxu0 0
        %1253 = vmatprep.subr.bf16.mxu0 0
        %1254 = vmatpush1.bf16.msra.mxu0 0
        %1255 = vmatprep.mubr.bf16.mxu0 0
        %1256 = vmatmul.mubr.bf16.gmra.mrb[0].mxu0 %v1218
        %v1257 = vpop.f32.mrb[0].mxu0
        %v1258 = vadd.f32 0.0, %v1257
        %v1259 = vpop.f32.mrb[0].mxu0
        %v1260 = vpop.f32.mrb[0].mxu0
        %v1261 = vpop.f32.mrb[0].mxu0
        %1262 = vdwg.mxu0
        %v1264 = vunpack.c.l.b16 %v1075
        %v1265 = vpack.c.b16 %v1264, %v1264
        %1266 = vrot.lane.b32.xlu0 %v1265, 96
        %v1267 = vpop.permute.xlu0 %1266
        %v1269 = vsel %vm947, %v1211, 0
        %v1272 = vsel %vm975, %v1267, 0
        %1274 = vmatprep.subr.bf16.mxu0 0
        %1275 = vmatpush1.bf16.msra.mxu0 %v1272
        %1276 = vmatprep.subr.bf16.mxu0 0
        %1277 = vmatpush1.bf16.msra.mxu0 0
        %1278 = vmatprep.subr.bf16.mxu0 0
        %1279 = vmatpush1.bf16.msra.mxu0 0
        %1280 = vmatprep.subr.bf16.mxu0 0
        %1281 = vmatpush1.bf16.msra.mxu0 0
        %1282 = vmatprep.subr.bf16.mxu0 0
        %1283 = vmatpush1.bf16.msra.mxu0 0
        %1284 = vmatprep.subr.bf16.mxu0 0
        %1285 = vmatpush1.bf16.msra.mxu0 0
        %1286 = vmatprep.subr.bf16.mxu0 0
        %1287 = vmatpush1.bf16.msra.mxu0 0
        %1288 = vmatprep.subr.bf16.mxu0 0
        %1289 = vmatpush1.bf16.msra.mxu0 0
        %1290 = vmatprep.subr.bf16.mxu0 0
        %1291 = vmatpush1.bf16.msra.mxu0 0
        %1292 = vmatprep.subr.bf16.mxu0 0
        %1293 = vmatpush1.bf16.msra.mxu0 0
        %1294 = vmatprep.subr.bf16.mxu0 0
        %1295 = vmatpush1.bf16.msra.mxu0 0
        %1296 = vmatprep.subr.bf16.mxu0 0
        %1297 = vmatpush1.bf16.msra.mxu0 0
        %1298 = vmatprep.subr.bf16.mxu0 0
        %1299 = vmatpush1.bf16.msra.mxu0 0
        %1300 = vmatprep.subr.bf16.mxu0 0
        %1301 = vmatpush1.bf16.msra.mxu0 0
        %1302 = vmatprep.subr.bf16.mxu0 0
        %1303 = vmatpush1.bf16.msra.mxu0 0
        %1304 = vmatprep.subr.bf16.mxu0 0
        %1305 = vmatpush1.bf16.msra.mxu0 0
        %1306 = vmatprep.mubr.bf16.mxu0 0
        %1307 = vmatmul.mubr.bf16.gmra.mrb[0].mxu0 %v1269
        %v1308 = vpop.f32.mrb[0].mxu0
        %v1309 = vadd.f32 0.0, %v1308
        %v1310 = vpop.f32.mrb[0].mxu0
        %v1311 = vpop.f32.mrb[0].mxu0
        %v1312 = vpop.f32.mrb[0].mxu0
        %1313 = vdwg.mxu0
        %v1314 = vpack.c.bf16 %v1258, %v1258
        %v1315 = vpack.c.bf16 %v1309, %v1309
        %v1318 = vunpack.c.l.b16 %v1314
        %v1319 = vunpack.c.l.b16 %v1315
        %v1320 = vpack.c.b16 %v1318, %v1318
        %v1321 = vpack.c.b16 %v1319, %v1319
        %1322 = vrot.lane.b32.xlu0 %v1320, 32
        %v1323 = vpop.permute.xlu0 %1322
        %1324 = vrot.lane.b32.xlu0 %v1321, 32
        %v1325 = vpop.permute.xlu0 %1324
        %vm1328 = vcmask 519424
        %1329 = vst.msk [vmem:[#allocation3] sm:$0xf] %vm1328, %v1323
        %1330 = vst.msk [vmem:[#allocation3 + $0x8] sm:$0xf] %vm1328, %v1325
        %v1331 = vld [vmem:[#allocation2] sm:$0xf]
        %v1332 = vld [vmem:[#allocation2 + $0x14] sm:$0xf]
        %v1333 = vld [vmem:[#allocation2 + $0x8] sm:$0xf]
        %v1334 = vld [vmem:[#allocation2 + $0x1c] sm:$0xf]
        %v1335 = vld [vmem:[#allocation2 + $0xc] sm:$0xf]
        %v1336 = vld [vmem:[#allocation2 + $0x20] sm:$0xf]
        %v1338 = vunpack.c.l.b16 %v1331
        %v1339 = vpack.c.b16 %v1338, %v1338
        %1340 = vrot.lane.b32.xlu0 %v1339, 64
        %v1341 = vpop.permute.xlu0 %1340
        %v1343 = vsel %vm849, %v1341, 0
        %v1346 = vsel %vm849, %v1333, 0
        %1348 = vmatprep.subr.bf16.mxu0 0
        %1349 = vmatpush1.bf16.xpose.msra.mxu0 %v1346
        %1350 = vmatprep.subr.bf16.mxu0 0
        %1351 = vmatpush1.bf16.xpose.msra.mxu0 0
        %1352 = vmatprep.subr.bf16.mxu0 0
        %1353 = vmatpush1.bf16.xpose.msra.mxu0 0
        %1354 = vmatprep.subr.bf16.mxu0 0
        %1355 = vmatpush1.bf16.xpose.msra.mxu0 0
        %1356 = vmatprep.subr.bf16.mxu0 0
        %1357 = vmatpush1.bf16.xpose.msra.mxu0 0
        %1358 = vmatprep.subr.bf16.mxu0 0
        %1359 = vmatpush1.bf16.xpose.msra.mxu0 0
        %1360 = vmatprep.subr.bf16.mxu0 0
        %1361 = vmatpush1.bf16.xpose.msra.mxu0 0
        %1362 = vmatprep.subr.bf16.mxu0 0
        %1363 = vmatpush1.bf16.xpose.msra.mxu0 0
        %1364 = vmatprep.subr.bf16.mxu0 0
        %1365 = vmatpush1.bf16.xpose.msra.mxu0 0
        %1366 = vmatprep.subr.bf16.mxu0 0
        %1367 = vmatpush1.bf16.xpose.msra.mxu0 0
        %1368 = vmatprep.subr.bf16.mxu0 0
        %1369 = vmatpush1.bf16.xpose.msra.mxu0 0
        %1370 = vmatprep.subr.bf16.mxu0 0
        %1371 = vmatpush1.bf16.xpose.msra.mxu0 0
        %1372 = vmatprep.subr.bf16.mxu0 0
        %1373 = vmatpush1.bf16.xpose.msra.mxu0 0
        %1374 = vmatprep.subr.bf16.mxu0 0
        %1375 = vmatpush1.bf16.xpose.msra.mxu0 0
        %1376 = vmatprep.subr.bf16.mxu0 0
        %1377 = vmatpush1.bf16.xpose.msra.mxu0 0
        %1378 = vmatprep.subr.bf16.mxu0 0
        %1379 = vmatpush1.bf16.xpose.msra.mxu0 0
        %1380 = vmatprep.mubr.bf16.mxu0 0
        %1381 = vmatmul.mubr.bf16.gmra.mrb[0].mxu0 %v1343
        %v1382 = vpop.f32.mrb[0].mxu0
        %v1383 = vadd.f32 %v837, %v1382
        %v1384 = vpop.f32.mrb[0].mxu0
        %v1385 = vpop.f32.mrb[0].mxu0
        %v1386 = vpop.f32.mrb[0].mxu0
        %1387 = vdwg.mxu0
        %v1389 = vunpack.c.l.b16 %v1332
        %v1390 = vpack.c.b16 %v1389, %v1389
        %1391 = vrot.lane.b32.xlu0 %v1390, 64
        %v1392 = vpop.permute.xlu0 %1391
        %v1394 = vsel %vm849, %v1392, 0
        %v1397 = vsel %vm849, %v1334, 0
        %1399 = vmatprep.subr.bf16.mxu0 0
        %1400 = vmatpush1.bf16.xpose.msra.mxu0 %v1397
        %1401 = vmatprep.subr.bf16.mxu0 0
        %1402 = vmatpush1.bf16.xpose.msra.mxu0 0
        %1403 = vmatprep.subr.bf16.mxu0 0
        %1404 = vmatpush1.bf16.xpose.msra.mxu0 0
        %1405 = vmatprep.subr.bf16.mxu0 0
        %1406 = vmatpush1.bf16.xpose.msra.mxu0 0
        %1407 = vmatprep.subr.bf16.mxu0 0
        %1408 = vmatpush1.bf16.xpose.msra.mxu0 0
        %1409 = vmatprep.subr.bf16.mxu0 0
        %1410 = vmatpush1.bf16.xpose.msra.mxu0 0
        %1411 = vmatprep.subr.bf16.mxu0 0
        %1412 = vmatpush1.bf16.xpose.msra.mxu0 0
        %1413 = vmatprep.subr.bf16.mxu0 0
        %1414 = vmatpush1.bf16.xpose.msra.mxu0 0
        %1415 = vmatprep.subr.bf16.mxu0 0
        %1416 = vmatpush1.bf16.xpose.msra.mxu0 0
        %1417 = vmatprep.subr.bf16.mxu0 0
        %1418 = vmatpush1.bf16.xpose.msra.mxu0 0
        %1419 = vmatprep.subr.bf16.mxu0 0
        %1420 = vmatpush1.bf16.xpose.msra.mxu0 0
        %1421 = vmatprep.subr.bf16.mxu0 0
        %1422 = vmatpush1.bf16.xpose.msra.mxu0 0
        %1423 = vmatprep.subr.bf16.mxu0 0
        %1424 = vmatpush1.bf16.xpose.msra.mxu0 0
        %1425 = vmatprep.subr.bf16.mxu0 0
        %1426 = vmatpush1.bf16.xpose.msra.mxu0 0
        %1427 = vmatprep.subr.bf16.mxu0 0
        %1428 = vmatpush1.bf16.xpose.msra.mxu0 0
        %1429 = vmatprep.subr.bf16.mxu0 0
        %1430 = vmatpush1.bf16.xpose.msra.mxu0 0
        %1431 = vmatprep.mubr.bf16.mxu0 0
        %1432 = vmatmul.mubr.bf16.gmra.mrb[0].mxu0 %v1394
        %v1433 = vpop.f32.mrb[0].mxu0
        %v1434 = vadd.f32 %v837, %v1433
        %v1435 = vpop.f32.mrb[0].mxu0
        %v1436 = vpop.f32.mrb[0].mxu0
        %v1437 = vpop.f32.mrb[0].mxu0
        %1438 = vdwg.mxu0
        %v1439 = vsel %vm947, %v1383, -inf
        %1440 = vmax.xlane.f32.xlu0 %v1439
        %v1441 = vpop.xlane.xlu0 %1440
        %v1442 = vsel %vm947, %v1434, -inf
        %1443 = vmax.xlane.f32.xlu0 %v1442
        %v1444 = vpop.xlane.xlu0 %1443
        %v1445 = vsub.f32 %v1383, %v1441
        %v1446 = vsub.f32 %v1434, %v1444
        %v1447 = vmul.f32 %v1445, 1.442695
        %v1448 = vpow.pop %v1447
        %v1449 = vmul.f32 %v1446, 1.442695
        %v1450 = vpow.pop %v1449
        %v1451 = vsel %vm947, %v1448, 0.0
        %1452 = vadd.xlane.f32.xlu0 %v1451
        %v1453 = vpop.xlane.xlu0 %1452
        %v1454 = vsel %vm947, %v1450, 0.0
        %1455 = vadd.xlane.f32.xlu0 %v1454
        %v1456 = vpop.xlane.xlu0 %1455
        %v1457 = vrcp.pop %v1453
        %v1458 = vrcp.pop %v1456
        %v1459 = vmul.f32 %v1448, %v1457
        %v1460 = vmul.f32 %v1450, %v1458
        %v1461 = vpack.c.bf16 %v1459, %v1459
        %v1462 = vpack.c.bf16 %v1460, %v1460
        %v1464 = vunpack.c.l.b16 %v1335
        %v1465 = vpack.c.b16 %v1464, %v1464
        %1466 = vrot.lane.b32.xlu0 %v1465, 64
        %v1467 = vpop.permute.xlu0 %1466
        %v1469 = vsel %vm947, %v1461, 0
        %v1472 = vsel %vm975, %v1467, 0
        %1474 = vmatprep.subr.bf16.mxu0 0
        %1475 = vmatpush1.bf16.msra.mxu0 %v1472
        %1476 = vmatprep.subr.bf16.mxu0 0
        %1477 = vmatpush1.bf16.msra.mxu0 0
        %1478 = vmatprep.subr.bf16.mxu0 0
        %1479 = vmatpush1.bf16.msra.mxu0 0
        %1480 = vmatprep.subr.bf16.mxu0 0
        %1481 = vmatpush1.bf16.msra.mxu0 0
        %1482 = vmatprep.subr.bf16.mxu0 0
        %1483 = vmatpush1.bf16.msra.mxu0 0
        %1484 = vmatprep.subr.bf16.mxu0 0
        %1485 = vmatpush1.bf16.msra.mxu0 0
        %1486 = vmatprep.subr.bf16.mxu0 0
        %1487 = vmatpush1.bf16.msra.mxu0 0
        %1488 = vmatprep.subr.bf16.mxu0 0
        %1489 = vmatpush1.bf16.msra.mxu0 0
        %1490 = vmatprep.subr.bf16.mxu0 0
        %1491 = vmatpush1.bf16.msra.mxu0 0
        %1492 = vmatprep.subr.bf16.mxu0 0
        %1493 = vmatpush1.bf16.msra.mxu0 0
        %1494 = vmatprep.subr.bf16.mxu0 0
        %1495 = vmatpush1.bf16.msra.mxu0 0
        %1496 = vmatprep.subr.bf16.mxu0 0
        %1497 = vmatpush1.bf16.msra.mxu0 0
        %1498 = vmatprep.subr.bf16.mxu0 0
        %1499 = vmatpush1.bf16.msra.mxu0 0
        %1500 = vmatprep.subr.bf16.mxu0 0
        %1501 = vmatpush1.bf16.msra.mxu0 0
        %1502 = vmatprep.subr.bf16.mxu0 0
        %1503 = vmatpush1.bf16.msra.mxu0 0
        %1504 = vmatprep.subr.bf16.mxu0 0
        %1505 = vmatpush1.bf16.msra.mxu0 0
        %1506 = vmatprep.mubr.bf16.mxu0 0
        %1507 = vmatmul.mubr.bf16.gmra.mrb[0].mxu0 %v1469
        %v1508 = vpop.f32.mrb[0].mxu0
        %v1509 = vadd.f32 0.0, %v1508
        %v1510 = vpop.f32.mrb[0].mxu0
        %v1511 = vpop.f32.mrb[0].mxu0
        %v1512 = vpop.f32.mrb[0].mxu0
        %1513 = vdwg.mxu0
        %v1515 = vunpack.c.l.b16 %v1336
        %v1516 = vpack.c.b16 %v1515, %v1515
        %1517 = vrot.lane.b32.xlu0 %v1516, 64
        %v1518 = vpop.permute.xlu0 %1517
        %v1520 = vsel %vm947, %v1462, 0
        %v1523 = vsel %vm975, %v1518, 0
        %1525 = vmatprep.subr.bf16.mxu0 0
        %1526 = vmatpush1.bf16.msra.mxu0 %v1523
        %1527 = vmatprep.subr.bf16.mxu0 0
        %1528 = vmatpush1.bf16.msra.mxu0 0
        %1529 = vmatprep.subr.bf16.mxu0 0
        %1530 = vmatpush1.bf16.msra.mxu0 0
        %1531 = vmatprep.subr.bf16.mxu0 0
        %1532 = vmatpush1.bf16.msra.mxu0 0
        %1533 = vmatprep.subr.bf16.mxu0 0
        %1534 = vmatpush1.bf16.msra.mxu0 0
        %1535 = vmatprep.subr.bf16.mxu0 0
        %1536 = vmatpush1.bf16.msra.mxu0 0
        %1537 = vmatprep.subr.bf16.mxu0 0
        %1538 = vmatpush1.bf16.msra.mxu0 0
        %1539 = vmatprep.subr.bf16.mxu0 0
        %1540 = vmatpush1.bf16.msra.mxu0 0
        %1541 = vmatprep.subr.bf16.mxu0 0
        %1542 = vmatpush1.bf16.msra.mxu0 0
        %1543 = vmatprep.subr.bf16.mxu0 0
        %1544 = vmatpush1.bf16.msra.mxu0 0
        %1545 = vmatprep.subr.bf16.mxu0 0
        %1546 = vmatpush1.bf16.msra.mxu0 0
        %1547 = vmatprep.subr.bf16.mxu0 0
        %1548 = vmatpush1.bf16.msra.mxu0 0
        %1549 = vmatprep.subr.bf16.mxu0 0
        %1550 = vmatpush1.bf16.msra.mxu0 0
        %1551 = vmatprep.subr.bf16.mxu0 0
        %1552 = vmatpush1.bf16.msra.mxu0 0
        %1553 = vmatprep.subr.bf16.mxu0 0
        %1554 = vmatpush1.bf16.msra.mxu0 0
        %1555 = vmatprep.subr.bf16.mxu0 0
        %1556 = vmatpush1.bf16.msra.mxu0 0
        %1557 = vmatprep.mubr.bf16.mxu0 0
        %1558 = vmatmul.mubr.bf16.gmra.mrb[0].mxu0 %v1520
        %v1559 = vpop.f32.mrb[0].mxu0
        %v1560 = vadd.f32 0.0, %v1559
        %v1561 = vpop.f32.mrb[0].mxu0
        %v1562 = vpop.f32.mrb[0].mxu0
        %v1563 = vpop.f32.mrb[0].mxu0
        %1564 = vdwg.mxu0
        %v1565 = vpack.c.bf16 %v1509, %v1509
        %v1566 = vpack.c.bf16 %v1560, %v1560
        %v1569 = vunpack.c.l.b16 %v1565
        %v1570 = vunpack.c.l.b16 %v1566
        %v1571 = vpack.c.b16 %v1569, %v1569
        %v1572 = vpack.c.b16 %v1570, %v1570
        %1573 = vrot.lane.b32.xlu0 %v1571, 64
        %v1574 = vpop.permute.xlu0 %1573
        %1575 = vrot.lane.b32.xlu0 %v1572, 64
        %v1576 = vpop.permute.xlu0 %1575
        %vm1579 = vcmask 781824
        %1580 = vst.msk [vmem:[#allocation3] sm:$0xf] %vm1579, %v1574
        %1581 = vst.msk [vmem:[#allocation3 + $0x8] sm:$0xf] %vm1579, %v1576
        %v1582 = vld [vmem:[#allocation2] sm:$0xf]
        %v1583 = vld [vmem:[#allocation2 + $0x14] sm:$0xf]
        %v1584 = vld [vmem:[#allocation2 + $0x8] sm:$0xf]
        %v1585 = vld [vmem:[#allocation2 + $0x1c] sm:$0xf]
        %v1586 = vld [vmem:[#allocation2 + $0xc] sm:$0xf]
        %v1587 = vld [vmem:[#allocation2 + $0x20] sm:$0xf]
        %v1589 = vunpack.c.l.b16 %v1582
        %v1590 = vpack.c.b16 %v1589, %v1589
        %1591 = vrot.lane.b32.xlu0 %v1590, 32
        %v1592 = vpop.permute.xlu0 %1591
        %v1594 = vunpack.c.l.b16 %v1584
        %v1595 = vpack.c.b16 %v1594, %v1594
        %1596 = vrot.lane.b32.xlu0 %v1595, 96
        %v1597 = vpop.permute.xlu0 %1596
        %v1599 = vsel %vm849, %v1592, 0
        %v1602 = vsel %vm849, %v1597, 0
        %1604 = vmatprep.subr.bf16.mxu0 0
        %1605 = vmatpush1.bf16.xpose.msra.mxu0 %v1602
        %1606 = vmatprep.subr.bf16.mxu0 0
        %1607 = vmatpush1.bf16.xpose.msra.mxu0 0
        %1608 = vmatprep.subr.bf16.mxu0 0
        %1609 = vmatpush1.bf16.xpose.msra.mxu0 0
        %1610 = vmatprep.subr.bf16.mxu0 0
        %1611 = vmatpush1.bf16.xpose.msra.mxu0 0
        %1612 = vmatprep.subr.bf16.mxu0 0
        %1613 = vmatpush1.bf16.xpose.msra.mxu0 0
        %1614 = vmatprep.subr.bf16.mxu0 0
        %1615 = vmatpush1.bf16.xpose.msra.mxu0 0
        %1616 = vmatprep.subr.bf16.mxu0 0
        %1617 = vmatpush1.bf16.xpose.msra.mxu0 0
        %1618 = vmatprep.subr.bf16.mxu0 0
        %1619 = vmatpush1.bf16.xpose.msra.mxu0 0
        %1620 = vmatprep.subr.bf16.mxu0 0
        %1621 = vmatpush1.bf16.xpose.msra.mxu0 0
        %1622 = vmatprep.subr.bf16.mxu0 0
        %1623 = vmatpush1.bf16.xpose.msra.mxu0 0
        %1624 = vmatprep.subr.bf16.mxu0 0
        %1625 = vmatpush1.bf16.xpose.msra.mxu0 0
        %1626 = vmatprep.subr.bf16.mxu0 0
        %1627 = vmatpush1.bf16.xpose.msra.mxu0 0
        %1628 = vmatprep.subr.bf16.mxu0 0
        %1629 = vmatpush1.bf16.xpose.msra.mxu0 0
        %1630 = vmatprep.subr.bf16.mxu0 0
        %1631 = vmatpush1.bf16.xpose.msra.mxu0 0
        %1632 = vmatprep.subr.bf16.mxu0 0
        %1633 = vmatpush1.bf16.xpose.msra.mxu0 0
        %1634 = vmatprep.subr.bf16.mxu0 0
        %1635 = vmatpush1.bf16.xpose.msra.mxu0 0
        %1636 = vmatprep.mubr.bf16.mxu0 0
        %1637 = vmatmul.mubr.bf16.gmra.mrb[0].mxu0 %v1599
        %v1638 = vpop.f32.mrb[0].mxu0
        %v1639 = vadd.f32 %v837, %v1638
        %v1640 = vpop.f32.mrb[0].mxu0
        %v1641 = vpop.f32.mrb[0].mxu0
        %v1642 = vpop.f32.mrb[0].mxu0
        %1643 = vdwg.mxu0
        %v1645 = vunpack.c.l.b16 %v1583
        %v1646 = vpack.c.b16 %v1645, %v1645
        %1647 = vrot.lane.b32.xlu0 %v1646, 32
        %v1648 = vpop.permute.xlu0 %1647
        %v1650 = vunpack.c.l.b16 %v1585
        %v1651 = vpack.c.b16 %v1650, %v1650
        %1652 = vrot.lane.b32.xlu0 %v1651, 96
        %v1653 = vpop.permute.xlu0 %1652
        %v1655 = vsel %vm849, %v1648, 0
        %v1658 = vsel %vm849, %v1653, 0
        %1660 = vmatprep.subr.bf16.mxu0 0
        %1661 = vmatpush1.bf16.xpose.msra.mxu0 %v1658
        %1662 = vmatprep.subr.bf16.mxu0 0
        %1663 = vmatpush1.bf16.xpose.msra.mxu0 0
        %1664 = vmatprep.subr.bf16.mxu0 0
        %1665 = vmatpush1.bf16.xpose.msra.mxu0 0
        %1666 = vmatprep.subr.bf16.mxu0 0
        %1667 = vmatpush1.bf16.xpose.msra.mxu0 0
        %1668 = vmatprep.subr.bf16.mxu0 0
        %1669 = vmatpush1.bf16.xpose.msra.mxu0 0
        %1670 = vmatprep.subr.bf16.mxu0 0
        %1671 = vmatpush1.bf16.xpose.msra.mxu0 0
        %1672 = vmatprep.subr.bf16.mxu0 0
        %1673 = vmatpush1.bf16.xpose.msra.mxu0 0
        %1674 = vmatprep.subr.bf16.mxu0 0
        %1675 = vmatpush1.bf16.xpose.msra.mxu0 0
        %1676 = vmatprep.subr.bf16.mxu0 0
        %1677 = vmatpush1.bf16.xpose.msra.mxu0 0
        %1678 = vmatprep.subr.bf16.mxu0 0
        %1679 = vmatpush1.bf16.xpose.msra.mxu0 0
        %1680 = vmatprep.subr.bf16.mxu0 0
        %1681 = vmatpush1.bf16.xpose.msra.mxu0 0
        %1682 = vmatprep.subr.bf16.mxu0 0
        %1683 = vmatpush1.bf16.xpose.msra.mxu0 0
        %1684 = vmatprep.subr.bf16.mxu0 0
        %1685 = vmatpush1.bf16.xpose.msra.mxu0 0
        %1686 = vmatprep.subr.bf16.mxu0 0
        %1687 = vmatpush1.bf16.xpose.msra.mxu0 0
        %1688 = vmatprep.subr.bf16.mxu0 0
        %1689 = vmatpush1.bf16.xpose.msra.mxu0 0
        %1690 = vmatprep.subr.bf16.mxu0 0
        %1691 = vmatpush1.bf16.xpose.msra.mxu0 0
        %1692 = vmatprep.mubr.bf16.mxu0 0
        %1693 = vmatmul.mubr.bf16.gmra.mrb[0].mxu0 %v1655
        %v1694 = vpop.f32.mrb[0].mxu0
        %v1695 = vadd.f32 %v837, %v1694
        %v1696 = vpop.f32.mrb[0].mxu0
        %v1697 = vpop.f32.mrb[0].mxu0
        %v1698 = vpop.f32.mrb[0].mxu0
        %1699 = vdwg.mxu0
        %v1700 = vsel %vm947, %v1639, -inf
        %1701 = vmax.xlane.f32.xlu0 %v1700
        %v1702 = vpop.xlane.xlu0 %1701
        %v1703 = vsel %vm947, %v1695, -inf
        %1704 = vmax.xlane.f32.xlu0 %v1703
        %v1705 = vpop.xlane.xlu0 %1704
        %v1706 = vsub.f32 %v1639, %v1702
        %v1707 = vsub.f32 %v1695, %v1705
        %v1708 = vmul.f32 %v1706, 1.442695
        %v1709 = vpow.pop %v1708
        %v1710 = vmul.f32 %v1707, 1.442695
        %v1711 = vpow.pop %v1710
        %v1712 = vsel %vm947, %v1709, 0.0
        %1713 = vadd.xlane.f32.xlu0 %v1712
        %v1714 = vpop.xlane.xlu0 %1713
        %v1715 = vsel %vm947, %v1711, 0.0
        %1716 = vadd.xlane.f32.xlu0 %v1715
        %v1717 = vpop.xlane.xlu0 %1716
        %v1718 = vrcp.pop %v1714
        %v1719 = vrcp.pop %v1717
        %v1720 = vmul.f32 %v1709, %v1718
        %v1721 = vmul.f32 %v1711, %v1719
        %v1722 = vpack.c.bf16 %v1720, %v1720
        %v1723 = vpack.c.bf16 %v1721, %v1721
        %v1725 = vunpack.c.l.b16 %v1586
        %v1726 = vpack.c.b16 %v1725, %v1725
        %1727 = vrot.lane.b32.xlu0 %v1726, 32
        %v1728 = vpop.permute.xlu0 %1727
        %v1730 = vsel %vm947, %v1722, 0
        %v1733 = vsel %vm975, %v1728, 0
        %1735 = vmatprep.subr.bf16.mxu0 0
        %1736 = vmatpush1.bf16.msra.mxu0 %v1733
        %1737 = vmatprep.subr.bf16.mxu0 0
        %1738 = vmatpush1.bf16.msra.mxu0 0
        %1739 = vmatprep.subr.bf16.mxu0 0
        %1740 = vmatpush1.bf16.msra.mxu0 0
        %1741 = vmatprep.subr.bf16.mxu0 0
        %1742 = vmatpush1.bf16.msra.mxu0 0
        %1743 = vmatprep.subr.bf16.mxu0 0
        %1744 = vmatpush1.bf16.msra.mxu0 0
        %1745 = vmatprep.subr.bf16.mxu0 0
        %1746 = vmatpush1.bf16.msra.mxu0 0
        %1747 = vmatprep.subr.bf16.mxu0 0
        %1748 = vmatpush1.bf16.msra.mxu0 0
        %1749 = vmatprep.subr.bf16.mxu0 0
        %1750 = vmatpush1.bf16.msra.mxu0 0
        %1751 = vmatprep.subr.bf16.mxu0 0
        %1752 = vmatpush1.bf16.msra.mxu0 0
        %1753 = vmatprep.subr.bf16.mxu0 0
        %1754 = vmatpush1.bf16.msra.mxu0 0
        %1755 = vmatprep.subr.bf16.mxu0 0
        %1756 = vmatpush1.bf16.msra.mxu0 0
        %1757 = vmatprep.subr.bf16.mxu0 0
        %1758 = vmatpush1.bf16.msra.mxu0 0
        %1759 = vmatprep.subr.bf16.mxu0 0
        %1760 = vmatpush1.bf16.msra.mxu0 0
        %1761 = vmatprep.subr.bf16.mxu0 0
        %1762 = vmatpush1.bf16.msra.mxu0 0
        %1763 = vmatprep.subr.bf16.mxu0 0
        %1764 = vmatpush1.bf16.msra.mxu0 0
        %1765 = vmatprep.subr.bf16.mxu0 0
        %1766 = vmatpush1.bf16.msra.mxu0 0
        %1767 = vmatprep.mubr.bf16.mxu0 0
        %1768 = vmatmul.mubr.bf16.gmra.mrb[0].mxu0 %v1730
        %v1769 = vpop.f32.mrb[0].mxu0
        %v1770 = vadd.f32 0.0, %v1769
        %v1771 = vpop.f32.mrb[0].mxu0
        %v1772 = vpop.f32.mrb[0].mxu0
        %v1773 = vpop.f32.mrb[0].mxu0
        %1774 = vdwg.mxu0
        %v1776 = vunpack.c.l.b16 %v1587
        %v1777 = vpack.c.b16 %v1776, %v1776
        %1778 = vrot.lane.b32.xlu0 %v1777, 32
        %v1779 = vpop.permute.xlu0 %1778
        %v1781 = vsel %vm947, %v1723, 0
        %v1784 = vsel %vm975, %v1779, 0
        %1786 = vmatprep.subr.bf16.mxu0 0
        %1787 = vmatpush1.bf16.msra.mxu0 %v1784
        %1788 = vmatprep.subr.bf16.mxu0 0
        %1789 = vmatpush1.bf16.msra.mxu0 0
        %1790 = vmatprep.subr.bf16.mxu0 0
        %1791 = vmatpush1.bf16.msra.mxu0 0
        %1792 = vmatprep.subr.bf16.mxu0 0
        %1793 = vmatpush1.bf16.msra.mxu0 0
        %1794 = vmatprep.subr.bf16.mxu0 0
        %1795 = vmatpush1.bf16.msra.mxu0 0
        %1796 = vmatprep.subr.bf16.mxu0 0
        %1797 = vmatpush1.bf16.msra.mxu0 0
        %1798 = vmatprep.subr.bf16.mxu0 0
        %1799 = vmatpush1.bf16.msra.mxu0 0
        %1800 = vmatprep.subr.bf16.mxu0 0
        %1801 = vmatpush1.bf16.msra.mxu0 0
        %1802 = vmatprep.subr.bf16.mxu0 0
        %1803 = vmatpush1.bf16.msra.mxu0 0
        %1804 = vmatprep.subr.bf16.mxu0 0
        %1805 = vmatpush1.bf16.msra.mxu0 0
        %1806 = vmatprep.subr.bf16.mxu0 0
        %1807 = vmatpush1.bf16.msra.mxu0 0
        %1808 = vmatprep.subr.bf16.mxu0 0
        %1809 = vmatpush1.bf16.msra.mxu0 0
        %1810 = vmatprep.subr.bf16.mxu0 0
        %1811 = vmatpush1.bf16.msra.mxu0 0
        %1812 = vmatprep.subr.bf16.mxu0 0
        %1813 = vmatpush1.bf16.msra.mxu0 0
        %1814 = vmatprep.subr.bf16.mxu0 0
        %1815 = vmatpush1.bf16.msra.mxu0 0
        %1816 = vmatprep.subr.bf16.mxu0 0
        %1817 = vmatpush1.bf16.msra.mxu0 0
        %1818 = vmatprep.mubr.bf16.mxu0 0
        %1819 = vmatmul.mubr.bf16.gmra.mrb[0].mxu0 %v1781
        %v1820 = vpop.f32.mrb[0].mxu0
        %v1821 = vadd.f32 0.0, %v1820
        %v1822 = vpop.f32.mrb[0].mxu0
        %v1823 = vpop.f32.mrb[0].mxu0
        %v1824 = vpop.f32.mrb[0].mxu0
        %1825 = vdwg.mxu0
        %v1826 = vpack.c.bf16 %v1770, %v1770
        %v1827 = vpack.c.bf16 %v1821, %v1821
        %v1830 = vunpack.c.l.b16 %v1826
        %v1831 = vunpack.c.l.b16 %v1827
        %v1832 = vpack.c.b16 %v1830, %v1830
        %v1833 = vpack.c.b16 %v1831, %v1831
        %1834 = vrot.lane.b32.xlu0 %v1832, 96
        %v1835 = vpop.permute.xlu0 %1834
        %1836 = vrot.lane.b32.xlu0 %v1833, 96
        %v1837 = vpop.permute.xlu0 %1836
        %vm1840 = vcmask 1044224
        %1841 = vst.msk [vmem:[#allocation3] sm:$0xf] %vm1840, %v1835
        %1842 = vst.msk [vmem:[#allocation3 + $0x8] sm:$0xf] %vm1840, %v1837
        %v1843 = vld [vmem:[#allocation2 + $0x4] sm:$0xf]
        %v1844 = vld [vmem:[#allocation2 + $0x18] sm:$0xf]
        %v1845 = vld [vmem:[#allocation2 + $0x8] sm:$0xf]
        %v1846 = vld [vmem:[#allocation2 + $0x1c] sm:$0xf]
        %v1847 = vld [vmem:[#allocation2 + $0x10] sm:$0xf]
        %v1848 = vld [vmem:[#allocation2 + $0x24] sm:$0xf]
        %v1850 = vunpack.c.l.b16 %v1845
        %v1851 = vpack.c.b16 %v1850, %v1850
        %1852 = vrot.lane.b32.xlu0 %v1851, 64
        %v1853 = vpop.permute.xlu0 %1852
        %v1855 = vsel %vm849, %v1843, 0
        %v1858 = vsel %vm849, %v1853, 0
        %1860 = vmatprep.subr.bf16.mxu0 0
        %1861 = vmatpush1.bf16.xpose.msra.mxu0 %v1858
        %1862 = vmatprep.subr.bf16.mxu0 0
        %1863 = vmatpush1.bf16.xpose.msra.mxu0 0
        %1864 = vmatprep.subr.bf16.mxu0 0
        %1865 = vmatpush1.bf16.xpose.msra.mxu0 0
        %1866 = vmatprep.subr.bf16.mxu0 0
        %1867 = vmatpush1.bf16.xpose.msra.mxu0 0
        %1868 = vmatprep.subr.bf16.mxu0 0
        %1869 = vmatpush1.bf16.xpose.msra.mxu0 0
        %1870 = vmatprep.subr.bf16.mxu0 0
        %1871 = vmatpush1.bf16.xpose.msra.mxu0 0
        %1872 = vmatprep.subr.bf16.mxu0 0
        %1873 = vmatpush1.bf16.xpose.msra.mxu0 0
        %1874 = vmatprep.subr.bf16.mxu0 0
        %1875 = vmatpush1.bf16.xpose.msra.mxu0 0
        %1876 = vmatprep.subr.bf16.mxu0 0
        %1877 = vmatpush1.bf16.xpose.msra.mxu0 0
        %1878 = vmatprep.subr.bf16.mxu0 0
        %1879 = vmatpush1.bf16.xpose.msra.mxu0 0
        %1880 = vmatprep.subr.bf16.mxu0 0
        %1881 = vmatpush1.bf16.xpose.msra.mxu0 0
        %1882 = vmatprep.subr.bf16.mxu0 0
        %1883 = vmatpush1.bf16.xpose.msra.mxu0 0
        %1884 = vmatprep.subr.bf16.mxu0 0
        %1885 = vmatpush1.bf16.xpose.msra.mxu0 0
        %1886 = vmatprep.subr.bf16.mxu0 0
        %1887 = vmatpush1.bf16.xpose.msra.mxu0 0
        %1888 = vmatprep.subr.bf16.mxu0 0
        %1889 = vmatpush1.bf16.xpose.msra.mxu0 0
        %1890 = vmatprep.subr.bf16.mxu0 0
        %1891 = vmatpush1.bf16.xpose.msra.mxu0 0
        %1892 = vmatprep.mubr.bf16.mxu0 0
        %1893 = vmatmul.mubr.bf16.gmra.mrb[0].mxu0 %v1855
        %v1894 = vpop.f32.mrb[0].mxu0
        %v1895 = vadd.f32 %v837, %v1894
        %v1896 = vpop.f32.mrb[0].mxu0
        %v1897 = vpop.f32.mrb[0].mxu0
        %v1898 = vpop.f32.mrb[0].mxu0
        %1899 = vdwg.mxu0
        %v1901 = vunpack.c.l.b16 %v1846
        %v1902 = vpack.c.b16 %v1901, %v1901
        %1903 = vrot.lane.b32.xlu0 %v1902, 64
        %v1904 = vpop.permute.xlu0 %1903
        %v1906 = vsel %vm849, %v1844, 0
        %v1909 = vsel %vm849, %v1904, 0
        %1911 = vmatprep.subr.bf16.mxu0 0
        %1912 = vmatpush1.bf16.xpose.msra.mxu0 %v1909
        %1913 = vmatprep.subr.bf16.mxu0 0
        %1914 = vmatpush1.bf16.xpose.msra.mxu0 0
        %1915 = vmatprep.subr.bf16.mxu0 0
        %1916 = vmatpush1.bf16.xpose.msra.mxu0 0
        %1917 = vmatprep.subr.bf16.mxu0 0
        %1918 = vmatpush1.bf16.xpose.msra.mxu0 0
        %1919 = vmatprep.subr.bf16.mxu0 0
        %1920 = vmatpush1.bf16.xpose.msra.mxu0 0
        %1921 = vmatprep.subr.bf16.mxu0 0
        %1922 = vmatpush1.bf16.xpose.msra.mxu0 0
        %1923 = vmatprep.subr.bf16.mxu0 0
        %1924 = vmatpush1.bf16.xpose.msra.mxu0 0
        %1925 = vmatprep.subr.bf16.mxu0 0
        %1926 = vmatpush1.bf16.xpose.msra.mxu0 0
        %1927 = vmatprep.subr.bf16.mxu0 0
        %1928 = vmatpush1.bf16.xpose.msra.mxu0 0
        %1929 = vmatprep.subr.bf16.mxu0 0
        %1930 = vmatpush1.bf16.xpose.msra.mxu0 0
        %1931 = vmatprep.subr.bf16.mxu0 0
        %1932 = vmatpush1.bf16.xpose.msra.mxu0 0
        %1933 = vmatprep.subr.bf16.mxu0 0
        %1934 = vmatpush1.bf16.xpose.msra.mxu0 0
        %1935 = vmatprep.subr.bf16.mxu0 0
        %1936 = vmatpush1.bf16.xpose.msra.mxu0 0
        %1937 = vmatprep.subr.bf16.mxu0 0
        %1938 = vmatpush1.bf16.xpose.msra.mxu0 0
        %1939 = vmatprep.subr.bf16.mxu0 0
        %1940 = vmatpush1.bf16.xpose.msra.mxu0 0
        %1941 = vmatprep.subr.bf16.mxu0 0
        %1942 = vmatpush1.bf16.xpose.msra.mxu0 0
        %1943 = vmatprep.mubr.bf16.mxu0 0
        %1944 = vmatmul.mubr.bf16.gmra.mrb[0].mxu0 %v1906
        %v1945 = vpop.f32.mrb[0].mxu0
        %v1946 = vadd.f32 %v837, %v1945
        %v1947 = vpop.f32.mrb[0].mxu0
        %v1948 = vpop.f32.mrb[0].mxu0
        %v1949 = vpop.f32.mrb[0].mxu0
        %1950 = vdwg.mxu0
        %v1951 = vsel %vm947, %v1895, -inf
        %1952 = vmax.xlane.f32.xlu0 %v1951
        %v1953 = vpop.xlane.xlu0 %1952
        %v1954 = vsel %vm947, %v1946, -inf
        %1955 = vmax.xlane.f32.xlu0 %v1954
        %v1956 = vpop.xlane.xlu0 %1955
        %v1957 = vsub.f32 %v1895, %v1953
        %v1958 = vsub.f32 %v1946, %v1956
        %v1959 = vmul.f32 %v1957, 1.442695
        %v1960 = vpow.pop %v1959
        %v1961 = vmul.f32 %v1958, 1.442695
        %v1962 = vpow.pop %v1961
        %v1963 = vsel %vm947, %v1960, 0.0
        %1964 = vadd.xlane.f32.xlu0 %v1963
        %v1965 = vpop.xlane.xlu0 %1964
        %v1966 = vsel %vm947, %v1962, 0.0
        %1967 = vadd.xlane.f32.xlu0 %v1966
        %v1968 = vpop.xlane.xlu0 %1967
        %v1969 = vrcp.pop %v1965
        %v1970 = vrcp.pop %v1968
        %v1971 = vmul.f32 %v1960, %v1969
        %v1972 = vmul.f32 %v1962, %v1970
        %v1973 = vpack.c.bf16 %v1971, %v1971
        %v1974 = vpack.c.bf16 %v1972, %v1972
        %v1976 = vsel %vm947, %v1973, 0
        %v1979 = vsel %vm975, %v1847, 0
        %1981 = vmatprep.subr.bf16.mxu0 0
        %1982 = vmatpush1.bf16.msra.mxu0 %v1979
        %1983 = vmatprep.subr.bf16.mxu0 0
        %1984 = vmatpush1.bf16.msra.mxu0 0
        %1985 = vmatprep.subr.bf16.mxu0 0
        %1986 = vmatpush1.bf16.msra.mxu0 0
        %1987 = vmatprep.subr.bf16.mxu0 0
        %1988 = vmatpush1.bf16.msra.mxu0 0
        %1989 = vmatprep.subr.bf16.mxu0 0
        %1990 = vmatpush1.bf16.msra.mxu0 0
        %1991 = vmatprep.subr.bf16.mxu0 0
        %1992 = vmatpush1.bf16.msra.mxu0 0
        %1993 = vmatprep.subr.bf16.mxu0 0
        %1994 = vmatpush1.bf16.msra.mxu0 0
        %1995 = vmatprep.subr.bf16.mxu0 0
        %1996 = vmatpush1.bf16.msra.mxu0 0
        %1997 = vmatprep.subr.bf16.mxu0 0
        %1998 = vmatpush1.bf16.msra.mxu0 0
        %1999 = vmatprep.subr.bf16.mxu0 0
        %2000 = vmatpush1.bf16.msra.mxu0 0
        %2001 = vmatprep.subr.bf16.mxu0 0
        %2002 = vmatpush1.bf16.msra.mxu0 0
        %2003 = vmatprep.subr.bf16.mxu0 0
        %2004 = vmatpush1.bf16.msra.mxu0 0
        %2005 = vmatprep.subr.bf16.mxu0 0
        %2006 = vmatpush1.bf16.msra.mxu0 0
        %2007 = vmatprep.subr.bf16.mxu0 0
        %2008 = vmatpush1.bf16.msra.mxu0 0
        %2009 = vmatprep.subr.bf16.mxu0 0
        %2010 = vmatpush1.bf16.msra.mxu0 0
        %2011 = vmatprep.subr.bf16.mxu0 0
        %2012 = vmatpush1.bf16.msra.mxu0 0
        %2013 = vmatprep.mubr.bf16.mxu0 0
        %2014 = vmatmul.mubr.bf16.gmra.mrb[0].mxu0 %v1976
        %v2015 = vpop.f32.mrb[0].mxu0
        %v2016 = vadd.f32 0.0, %v2015
        %v2017 = vpop.f32.mrb[0].mxu0
        %v2018 = vpop.f32.mrb[0].mxu0
        %v2019 = vpop.f32.mrb[0].mxu0
        %2020 = vdwg.mxu0
        %v2022 = vsel %vm947, %v1974, 0
        %v2025 = vsel %vm975, %v1848, 0
        %2027 = vmatprep.subr.bf16.mxu0 0
        %2028 = vmatpush1.bf16.msra.mxu0 %v2025
        %2029 = vmatprep.subr.bf16.mxu0 0
        %2030 = vmatpush1.bf16.msra.mxu0 0
        %2031 = vmatprep.subr.bf16.mxu0 0
        %2032 = vmatpush1.bf16.msra.mxu0 0
        %2033 = vmatprep.subr.bf16.mxu0 0
        %2034 = vmatpush1.bf16.msra.mxu0 0
        %2035 = vmatprep.subr.bf16.mxu0 0
        %2036 = vmatpush1.bf16.msra.mxu0 0
        %2037 = vmatprep.subr.bf16.mxu0 0
        %2038 = vmatpush1.bf16.msra.mxu0 0
        %2039 = vmatprep.subr.bf16.mxu0 0
        %2040 = vmatpush1.bf16.msra.mxu0 0
        %2041 = vmatprep.subr.bf16.mxu0 0
        %2042 = vmatpush1.bf16.msra.mxu0 0
        %2043 = vmatprep.subr.bf16.mxu0 0
        %2044 = vmatpush1.bf16.msra.mxu0 0
        %2045 = vmatprep.subr.bf16.mxu0 0
        %2046 = vmatpush1.bf16.msra.mxu0 0
        %2047 = vmatprep.subr.bf16.mxu0 0
        %2048 = vmatpush1.bf16.msra.mxu0 0
        %2049 = vmatprep.subr.bf16.mxu0 0
        %2050 = vmatpush1.bf16.msra.mxu0 0
        %2051 = vmatprep.subr.bf16.mxu0 0
        %2052 = vmatpush1.bf16.msra.mxu0 0
        %2053 = vmatprep.subr.bf16.mxu0 0
        %2054 = vmatpush1.bf16.msra.mxu0 0
        %2055 = vmatprep.subr.bf16.mxu0 0
        %2056 = vmatpush1.bf16.msra.mxu0 0
        %2057 = vmatprep.subr.bf16.mxu0 0
        %2058 = vmatpush1.bf16.msra.mxu0 0
        %2059 = vmatprep.mubr.bf16.mxu0 0
        %2060 = vmatmul.mubr.bf16.gmra.mrb[0].mxu0 %v2022
        %v2061 = vpop.f32.mrb[0].mxu0
        %v2062 = vadd.f32 0.0, %v2061
        %v2063 = vpop.f32.mrb[0].mxu0
        %v2064 = vpop.f32.mrb[0].mxu0
        %v2065 = vpop.f32.mrb[0].mxu0
        %2066 = vdwg.mxu0
        %v2067 = vpack.c.bf16 %v2016, %v2016
        %v2068 = vpack.c.bf16 %v2062, %v2062
        %2069 = vst.msk [vmem:[#allocation3 + $0x4] sm:$0xf] %vm1067, %v2067
        %2070 = vst.msk [vmem:[#allocation3 + $0xc] sm:$0xf] %vm1067, %v2068
        %v2071 = vld [vmem:[#allocation2 + $0x4] sm:$0xf]
        %v2072 = vld [vmem:[#allocation2 + $0x18] sm:$0xf]
        %v2073 = vld [vmem:[#allocation2 + $0x8] sm:$0xf]
        %v2074 = vld [vmem:[#allocation2 + $0x1c] sm:$0xf]
        %v2075 = vld [vmem:[#allocation2 + $0x10] sm:$0xf]
        %v2076 = vld [vmem:[#allocation2 + $0x24] sm:$0xf]
        %v2078 = vunpack.c.l.b16 %v2071
        %v2079 = vpack.c.b16 %v2078, %v2078
        %2080 = vrot.lane.b32.xlu0 %v2079, 96
        %v2081 = vpop.permute.xlu0 %2080
        %v2083 = vunpack.c.l.b16 %v2073
        %v2084 = vpack.c.b16 %v2083, %v2083
        %2085 = vrot.lane.b32.xlu0 %v2084, 32
        %v2086 = vpop.permute.xlu0 %2085
        %v2088 = vsel %vm849, %v2081, 0
        %v2091 = vsel %vm849, %v2086, 0
        %2093 = vmatprep.subr.bf16.mxu0 0
        %2094 = vmatpush1.bf16.xpose.msra.mxu0 %v2091
        %2095 = vmatprep.subr.bf16.mxu0 0
        %2096 = vmatpush1.bf16.xpose.msra.mxu0 0
        %2097 = vmatprep.subr.bf16.mxu0 0
        %2098 = vmatpush1.bf16.xpose.msra.mxu0 0
        %2099 = vmatprep.subr.bf16.mxu0 0
        %2100 = vmatpush1.bf16.xpose.msra.mxu0 0
        %2101 = vmatprep.subr.bf16.mxu0 0
        %2102 = vmatpush1.bf16.xpose.msra.mxu0 0
        %2103 = vmatprep.subr.bf16.mxu0 0
        %2104 = vmatpush1.bf16.xpose.msra.mxu0 0
        %2105 = vmatprep.subr.bf16.mxu0 0
        %2106 = vmatpush1.bf16.xpose.msra.mxu0 0
        %2107 = vmatprep.subr.bf16.mxu0 0
        %2108 = vmatpush1.bf16.xpose.msra.mxu0 0
        %2109 = vmatprep.subr.bf16.mxu0 0
        %2110 = vmatpush1.bf16.xpose.msra.mxu0 0
        %2111 = vmatprep.subr.bf16.mxu0 0
        %2112 = vmatpush1.bf16.xpose.msra.mxu0 0
        %2113 = vmatprep.subr.bf16.mxu0 0
        %2114 = vmatpush1.bf16.xpose.msra.mxu0 0
        %2115 = vmatprep.subr.bf16.mxu0 0
        %2116 = vmatpush1.bf16.xpose.msra.mxu0 0
        %2117 = vmatprep.subr.bf16.mxu0 0
        %2118 = vmatpush1.bf16.xpose.msra.mxu0 0
        %2119 = vmatprep.subr.bf16.mxu0 0
        %2120 = vmatpush1.bf16.xpose.msra.mxu0 0
        %2121 = vmatprep.subr.bf16.mxu0 0
        %2122 = vmatpush1.bf16.xpose.msra.mxu0 0
        %2123 = vmatprep.subr.bf16.mxu0 0
        %2124 = vmatpush1.bf16.xpose.msra.mxu0 0
        %2125 = vmatprep.mubr.bf16.mxu0 0
        %2126 = vmatmul.mubr.bf16.gmra.mrb[0].mxu0 %v2088
        %v2127 = vpop.f32.mrb[0].mxu0
        %v2128 = vadd.f32 %v837, %v2127
        %v2129 = vpop.f32.mrb[0].mxu0
        %v2130 = vpop.f32.mrb[0].mxu0
        %v2131 = vpop.f32.mrb[0].mxu0
        %2132 = vdwg.mxu0
        %v2134 = vunpack.c.l.b16 %v2072
        %v2135 = vpack.c.b16 %v2134, %v2134
        %2136 = vrot.lane.b32.xlu0 %v2135, 96
        %v2137 = vpop.permute.xlu0 %2136
        %v2139 = vunpack.c.l.b16 %v2074
        %v2140 = vpack.c.b16 %v2139, %v2139
        %2141 = vrot.lane.b32.xlu0 %v2140, 32
        %v2142 = vpop.permute.xlu0 %2141
        %v2144 = vsel %vm849, %v2137, 0
        %v2147 = vsel %vm849, %v2142, 0
        %2149 = vmatprep.subr.bf16.mxu0 0
        %2150 = vmatpush1.bf16.xpose.msra.mxu0 %v2147
        %2151 = vmatprep.subr.bf16.mxu0 0
        %2152 = vmatpush1.bf16.xpose.msra.mxu0 0
        %2153 = vmatprep.subr.bf16.mxu0 0
        %2154 = vmatpush1.bf16.xpose.msra.mxu0 0
        %2155 = vmatprep.subr.bf16.mxu0 0
        %2156 = vmatpush1.bf16.xpose.msra.mxu0 0
        %2157 = vmatprep.subr.bf16.mxu0 0
        %2158 = vmatpush1.bf16.xpose.msra.mxu0 0
        %2159 = vmatprep.subr.bf16.mxu0 0
        %2160 = vmatpush1.bf16.xpose.msra.mxu0 0
        %2161 = vmatprep.subr.bf16.mxu0 0
        %2162 = vmatpush1.bf16.xpose.msra.mxu0 0
        %2163 = vmatprep.subr.bf16.mxu0 0
        %2164 = vmatpush1.bf16.xpose.msra.mxu0 0
        %2165 = vmatprep.subr.bf16.mxu0 0
        %2166 = vmatpush1.bf16.xpose.msra.mxu0 0
        %2167 = vmatprep.subr.bf16.mxu0 0
        %2168 = vmatpush1.bf16.xpose.msra.mxu0 0
        %2169 = vmatprep.subr.bf16.mxu0 0
        %2170 = vmatpush1.bf16.xpose.msra.mxu0 0
        %2171 = vmatprep.subr.bf16.mxu0 0
        %2172 = vmatpush1.bf16.xpose.msra.mxu0 0
        %2173 = vmatprep.subr.bf16.mxu0 0
        %2174 = vmatpush1.bf16.xpose.msra.mxu0 0
        %2175 = vmatprep.subr.bf16.mxu0 0
        %2176 = vmatpush1.bf16.xpose.msra.mxu0 0
        %2177 = vmatprep.subr.bf16.mxu0 0
        %2178 = vmatpush1.bf16.xpose.msra.mxu0 0
        %2179 = vmatprep.subr.bf16.mxu0 0
        %2180 = vmatpush1.bf16.xpose.msra.mxu0 0
        %2181 = vmatprep.mubr.bf16.mxu0 0
        %2182 = vmatmul.mubr.bf16.gmra.mrb[0].mxu0 %v2144
        %v2183 = vpop.f32.mrb[0].mxu0
        %v2184 = vadd.f32 %v837, %v2183
        %v2185 = vpop.f32.mrb[0].mxu0
        %v2186 = vpop.f32.mrb[0].mxu0
        %v2187 = vpop.f32.mrb[0].mxu0
        %2188 = vdwg.mxu0
        %v2189 = vsel %vm947, %v2128, -inf
        %2190 = vmax.xlane.f32.xlu0 %v2189
        %v2191 = vpop.xlane.xlu0 %2190
        %v2192 = vsel %vm947, %v2184, -inf
        %2193 = vmax.xlane.f32.xlu0 %v2192
        %v2194 = vpop.xlane.xlu0 %2193
        %v2195 = vsub.f32 %v2128, %v2191
        %v2196 = vsub.f32 %v2184, %v2194
        %v2197 = vmul.f32 %v2195, 1.442695
        %v2198 = vpow.pop %v2197
        %v2199 = vmul.f32 %v2196, 1.442695
        %v2200 = vpow.pop %v2199
        %v2201 = vsel %vm947, %v2198, 0.0
        %2202 = vadd.xlane.f32.xlu0 %v2201
        %v2203 = vpop.xlane.xlu0 %2202
        %v2204 = vsel %vm947, %v2200, 0.0
        %2205 = vadd.xlane.f32.xlu0 %v2204
        %v2206 = vpop.xlane.xlu0 %2205
        %v2207 = vrcp.pop %v2203
        %v2208 = vrcp.pop %v2206
        %v2209 = vmul.f32 %v2198, %v2207
        %v2210 = vmul.f32 %v2200, %v2208
        %v2211 = vpack.c.bf16 %v2209, %v2209
        %v2212 = vpack.c.bf16 %v2210, %v2210
        %v2214 = vunpack.c.l.b16 %v2075
        %v2215 = vpack.c.b16 %v2214, %v2214
        %2216 = vrot.lane.b32.xlu0 %v2215, 96
        %v2217 = vpop.permute.xlu0 %2216
        %v2219 = vsel %vm947, %v2211, 0
        %v2222 = vsel %vm975, %v2217, 0
        %2224 = vmatprep.subr.bf16.mxu0 0
        %2225 = vmatpush1.bf16.msra.mxu0 %v2222
        %2226 = vmatprep.subr.bf16.mxu0 0
        %2227 = vmatpush1.bf16.msra.mxu0 0
        %2228 = vmatprep.subr.bf16.mxu0 0
        %2229 = vmatpush1.bf16.msra.mxu0 0
        %2230 = vmatprep.subr.bf16.mxu0 0
        %2231 = vmatpush1.bf16.msra.mxu0 0
        %2232 = vmatprep.subr.bf16.mxu0 0
        %2233 = vmatpush1.bf16.msra.mxu0 0
        %2234 = vmatprep.subr.bf16.mxu0 0
        %2235 = vmatpush1.bf16.msra.mxu0 0
        %2236 = vmatprep.subr.bf16.mxu0 0
        %2237 = vmatpush1.bf16.msra.mxu0 0
        %2238 = vmatprep.subr.bf16.mxu0 0
        %2239 = vmatpush1.bf16.msra.mxu0 0
        %2240 = vmatprep.subr.bf16.mxu0 0
        %2241 = vmatpush1.bf16.msra.mxu0 0
        %2242 = vmatprep.subr.bf16.mxu0 0
        %2243 = vmatpush1.bf16.msra.mxu0 0
        %2244 = vmatprep.subr.bf16.mxu0 0
        %2245 = vmatpush1.bf16.msra.mxu0 0
        %2246 = vmatprep.subr.bf16.mxu0 0
        %2247 = vmatpush1.bf16.msra.mxu0 0
        %2248 = vmatprep.subr.bf16.mxu0 0
        %2249 = vmatpush1.bf16.msra.mxu0 0
        %2250 = vmatprep.subr.bf16.mxu0 0
        %2251 = vmatpush1.bf16.msra.mxu0 0
        %2252 = vmatprep.subr.bf16.mxu0 0
        %2253 = vmatpush1.bf16.msra.mxu0 0
        %2254 = vmatprep.subr.bf16.mxu0 0
        %2255 = vmatpush1.bf16.msra.mxu0 0
        %2256 = vmatprep.mubr.bf16.mxu0 0
        %2257 = vmatmul.mubr.bf16.gmra.mrb[0].mxu0 %v2219
        %v2258 = vpop.f32.mrb[0].mxu0
        %v2259 = vadd.f32 0.0, %v2258
        %v2260 = vpop.f32.mrb[0].mxu0
        %v2261 = vpop.f32.mrb[0].mxu0
        %v2262 = vpop.f32.mrb[0].mxu0
        %2263 = vdwg.mxu0
        %v2265 = vunpack.c.l.b16 %v2076
        %v2266 = vpack.c.b16 %v2265, %v2265
        %2267 = vrot.lane.b32.xlu0 %v2266, 96
        %v2268 = vpop.permute.xlu0 %2267
        %v2270 = vsel %vm947, %v2212, 0
        %v2273 = vsel %vm975, %v2268, 0
        %2275 = vmatprep.subr.bf16.mxu0 0
        %2276 = vmatpush1.bf16.msra.mxu0 %v2273
        %2277 = vmatprep.subr.bf16.mxu0 0
        %2278 = vmatpush1.bf16.msra.mxu0 0
        %2279 = vmatprep.subr.bf16.mxu0 0
        %2280 = vmatpush1.bf16.msra.mxu0 0
        %2281 = vmatprep.subr.bf16.mxu0 0
        %2282 = vmatpush1.bf16.msra.mxu0 0
        %2283 = vmatprep.subr.bf16.mxu0 0
        %2284 = vmatpush1.bf16.msra.mxu0 0
        %2285 = vmatprep.subr.bf16.mxu0 0
        %2286 = vmatpush1.bf16.msra.mxu0 0
        %2287 = vmatprep.subr.bf16.mxu0 0
        %2288 = vmatpush1.bf16.msra.mxu0 0
        %2289 = vmatprep.subr.bf16.mxu0 0
        %2290 = vmatpush1.bf16.msra.mxu0 0
        %2291 = vmatprep.subr.bf16.mxu0 0
        %2292 = vmatpush1.bf16.msra.mxu0 0
        %2293 = vmatprep.subr.bf16.mxu0 0
        %2294 = vmatpush1.bf16.msra.mxu0 0
        %2295 = vmatprep.subr.bf16.mxu0 0
        %2296 = vmatpush1.bf16.msra.mxu0 0
        %2297 = vmatprep.subr.bf16.mxu0 0
        %2298 = vmatpush1.bf16.msra.mxu0 0
        %2299 = vmatprep.subr.bf16.mxu0 0
        %2300 = vmatpush1.bf16.msra.mxu0 0
        %2301 = vmatprep.subr.bf16.mxu0 0
        %2302 = vmatpush1.bf16.msra.mxu0 0
        %2303 = vmatprep.subr.bf16.mxu0 0
        %2304 = vmatpush1.bf16.msra.mxu0 0
        %2305 = vmatprep.subr.bf16.mxu0 0
        %2306 = vmatpush1.bf16.msra.mxu0 0
        %2307 = vmatprep.mubr.bf16.mxu0 0
        %2308 = vmatmul.mubr.bf16.gmra.mrb[0].mxu0 %v2270
        %v2309 = vpop.f32.mrb[0].mxu0
        %v2310 = vadd.f32 0.0, %v2309
        %v2311 = vpop.f32.mrb[0].mxu0
        %v2312 = vpop.f32.mrb[0].mxu0
        %v2313 = vpop.f32.mrb[0].mxu0
        %2314 = vdwg.mxu0
        %v2315 = vpack.c.bf16 %v2259, %v2259
        %v2316 = vpack.c.bf16 %v2310, %v2310
        %v2319 = vunpack.c.l.b16 %v2315
        %v2320 = vunpack.c.l.b16 %v2316
        %v2321 = vpack.c.b16 %v2319, %v2319
        %v2322 = vpack.c.b16 %v2320, %v2320
        %2323 = vrot.lane.b32.xlu0 %v2321, 32
        %v2324 = vpop.permute.xlu0 %2323
        %2325 = vrot.lane.b32.xlu0 %v2322, 32
        %v2326 = vpop.permute.xlu0 %2325
        %2329 = vst.msk [vmem:[#allocation3 + $0x4] sm:$0xf] %vm1328, %v2324
        %2330 = vst.msk [vmem:[#allocation3 + $0xc] sm:$0xf] %vm1328, %v2326
        %v2331 = vld [vmem:[#allocation3] sm:$0xff]
        %v2332 = vld [vmem:[#allocation3 + $0x8] sm:$0xff]
        %v2333 = vld [vmem:[#allocation9] sm:$0xff]
        %v2334 = vld [vmem:[#allocation9 + $0x8] sm:$0xff]
        %v2335 = vld [vmem:[#allocation9 + $0x10] sm:$0xff]
        %v2336 = vld [vmem:[#allocation9 + $0x18] sm:$0xff]
        %v2337 = vld [vmem:[#allocation9 + $0x20] sm:$0xff]
        %v2338 = vld [vmem:[#allocation9 + $0x28] sm:$0xff]
        %v2339 = vld [vmem:[#allocation9 + $0x30] sm:$0xff]
        %v2340 = vld [vmem:[#allocation9 + $0x38] sm:$0xff]
        %v2341 = vld [vmem:[#allocation9 + $0x40] sm:$0xff]
        %v2342 = vld [vmem:[#allocation9 + $0x48] sm:$0xff]
        %v2343 = vld [vmem:[#allocation9 + $0x50] sm:$0xff]
        %v2344 = vld [vmem:[#allocation9 + $0x58] sm:$0xff]
        %v2345 = vld [vmem:[#allocation9 + $0x60] sm:$0xff]
        %v2346 = vld [vmem:[#allocation9 + $0x68] sm:$0xff]
        %v2347 = vld [vmem:[#allocation9 + $0x70] sm:$0xff]
        %v2348 = vld [vmem:[#allocation9 + $0x78] sm:$0xff]
        %v2349 = vld [vmem:[#allocation9 + $0x80] sm:$0xff]
        %v2350 = vld [vmem:[#allocation9 + $0x88] sm:$0xff]
        %v2351 = vld [vmem:[#allocation9 + $0x90] sm:$0xff]
        %v2352 = vld [vmem:[#allocation9 + $0x98] sm:$0xff]
        %v2353 = vld [vmem:[#allocation9 + $0xa0] sm:$0xff]
        %v2354 = vld [vmem:[#allocation9 + $0xa8] sm:$0xff]
        %v2355 = vld [vmem:[#allocation9 + $0xb0] sm:$0xff]
        %v2356 = vld [vmem:[#allocation9 + $0xb8] sm:$0xff]
        %v2357 = vld [vmem:[%s3] sm:$0x3]
        %v2359 = vlaneseq
        %v2360 = vshrl.u32 %v2359, 7
        %v2361 = vsub.s32 0, %v2360
        %v2362 = vrot.slane %v2357, %v2361
        %v2363 = vlaneseq
        %v2364 = vshrl.u32 %v2363, 7
        %v2365 = vsub.s32 1, %v2364
        %v2366 = vrot.slane %v2357, %v2365
        %v2371 = vunpack.c.l.b16 %v2331
        %v2372 = vunpack.c.h.b16 %v2331
        %v2373 = vunpack.c.l.b16 %v2332
        %v2374 = vunpack.c.h.b16 %v2332
        %v2375 = vpack.c.b16 %v2373, %v2371
        %v2376 = vpack.c.b16 %v2374, %v2372
        %v2402 = vunpack.c.l.b16 %v2333
        %v2403 = vunpack.c.h.b16 %v2333
        %v2404 = vunpack.c.l.b16 %v2334
        %v2405 = vunpack.c.h.b16 %v2334
        %v2406 = vunpack.c.l.b16 %v2335
        %v2407 = vunpack.c.h.b16 %v2335
        %v2408 = vunpack.c.l.b16 %v2336
        %v2409 = vunpack.c.h.b16 %v2336
        %v2410 = vunpack.c.l.b16 %v2337
        %v2411 = vunpack.c.h.b16 %v2337
        %v2412 = vunpack.c.l.b16 %v2338
        %v2413 = vunpack.c.h.b16 %v2338
        %v2414 = vunpack.c.l.b16 %v2339
        %v2415 = vunpack.c.h.b16 %v2339
        %v2416 = vunpack.c.l.b16 %v2340
        %v2417 = vunpack.c.h.b16 %v2340
        %v2418 = vunpack.c.l.b16 %v2341
        %v2419 = vunpack.c.h.b16 %v2341
        %v2420 = vunpack.c.l.b16 %v2342
        %v2421 = vunpack.c.h.b16 %v2342
        %v2422 = vunpack.c.l.b16 %v2343
        %v2423 = vunpack.c.h.b16 %v2343
        %v2424 = vunpack.c.l.b16 %v2344
        %v2425 = vunpack.c.h.b16 %v2344
        %v2426 = vunpack.c.l.b16 %v2345
        %v2427 = vunpack.c.h.b16 %v2345
        %v2428 = vunpack.c.l.b16 %v2346
        %v2429 = vunpack.c.h.b16 %v2346
        %v2430 = vunpack.c.l.b16 %v2347
        %v2431 = vunpack.c.h.b16 %v2347
        %v2432 = vunpack.c.l.b16 %v2348
        %v2433 = vunpack.c.h.b16 %v2348
        %v2434 = vunpack.c.l.b16 %v2349
        %v2435 = vunpack.c.h.b16 %v2349
        %v2436 = vunpack.c.l.b16 %v2350
        %v2437 = vunpack.c.h.b16 %v2350
        %v2438 = vunpack.c.l.b16 %v2351
        %v2439 = vunpack.c.h.b16 %v2351
        %v2440 = vunpack.c.l.b16 %v2352
        %v2441 = vunpack.c.h.b16 %v2352
        %v2442 = vunpack.c.l.b16 %v2353
        %v2443 = vunpack.c.h.b16 %v2353
        %v2444 = vunpack.c.l.b16 %v2354
        %v2445 = vunpack.c.h.b16 %v2354
        %v2446 = vunpack.c.l.b16 %v2355
        %v2447 = vunpack.c.h.b16 %v2355
        %v2448 = vunpack.c.l.b16 %v2356
        %v2449 = vunpack.c.h.b16 %v2356
        %v2450 = vpack.c.b16 %v2404, %v2402
        %v2451 = vpack.c.b16 %v2405, %v2403
        %v2452 = vpack.c.b16 %v2408, %v2406
        %v2453 = vpack.c.b16 %v2409, %v2407
        %v2454 = vpack.c.b16 %v2412, %v2410
        %v2455 = vpack.c.b16 %v2413, %v2411
        %v2456 = vpack.c.b16 %v2416, %v2414
        %v2457 = vpack.c.b16 %v2417, %v2415
        %v2458 = vpack.c.b16 %v2420, %v2418
        %v2459 = vpack.c.b16 %v2421, %v2419
        %v2460 = vpack.c.b16 %v2424, %v2422
        %v2461 = vpack.c.b16 %v2425, %v2423
        %v2462 = vpack.c.b16 %v2428, %v2426
        %v2463 = vpack.c.b16 %v2429, %v2427
        %v2464 = vpack.c.b16 %v2432, %v2430
        %v2465 = vpack.c.b16 %v2433, %v2431
        %v2466 = vpack.c.b16 %v2436, %v2434
        %v2467 = vpack.c.b16 %v2437, %v2435
        %v2468 = vpack.c.b16 %v2440, %v2438
        %v2469 = vpack.c.b16 %v2441, %v2439
        %v2470 = vpack.c.b16 %v2444, %v2442
        %v2471 = vpack.c.b16 %v2445, %v2443
        %v2472 = vpack.c.b16 %v2448, %v2446
        %v2473 = vpack.c.b16 %v2449, %v2447
        %v2499 = vsel %vm652, %v2376, 0
        %2501 = vmatprep.subr.bf16.mxu0 %v2451
        %2502 = vmatpush1.bf16.msra.mxu0 %v2450
        %2503 = vmatprep.subr.bf16.mxu0 %v2453
        %2504 = vmatpush1.bf16.msra.mxu0 %v2452
        %2505 = vmatprep.subr.bf16.mxu0 %v2455
        %2506 = vmatpush1.bf16.msra.mxu0 %v2454
        %2507 = vmatprep.subr.bf16.mxu0 %v2457
        %2508 = vmatpush1.bf16.msra.mxu0 %v2456
        %2509 = vmatprep.subr.bf16.mxu0 %v2459
        %2510 = vmatpush1.bf16.msra.mxu0 %v2458
        %2511 = vmatprep.subr.bf16.mxu0 %v2461
        %2512 = vmatpush1.bf16.msra.mxu0 %v2460
        %2513 = vmatprep.subr.bf16.mxu0 %v2463
        %2514 = vmatpush1.bf16.msra.mxu0 %v2462
        %2515 = vmatprep.subr.bf16.mxu0 %v2465
        %2516 = vmatpush1.bf16.msra.mxu0 %v2464
        %2517 = vmatprep.subr.bf16.mxu0 %v2467
        %2518 = vmatpush1.bf16.msra.mxu0 %v2466
        %2519 = vmatprep.subr.bf16.mxu0 %v2469
        %2520 = vmatpush1.bf16.msra.mxu0 %v2468
        %2521 = vmatprep.subr.bf16.mxu0 %v2471
        %2522 = vmatpush1.bf16.msra.mxu0 %v2470
        %2523 = vmatprep.subr.bf16.mxu0 %v2473
        %2524 = vmatpush1.bf16.msra.mxu0 %v2472
        %2525 = vmatprep.subr.bf16.mxu0 0
        %2526 = vmatpush1.bf16.msra.mxu0 0
        %2527 = vmatprep.subr.bf16.mxu0 0
        %2528 = vmatpush1.bf16.msra.mxu0 0
        %2529 = vmatprep.subr.bf16.mxu0 0
        %2530 = vmatpush1.bf16.msra.mxu0 0
        %2531 = vmatprep.subr.bf16.mxu0 0
        %2532 = vmatpush1.bf16.msra.mxu0 0
        %2533 = vmatprep.mubr.bf16.mxu0 %v2499
        %2534 = vmatmul.mubr.bf16.gmra.mrb[0].mxu0 %v2375
        %v2535 = vpop.f32.mrb[0].mxu0
        %v2536 = vadd.f32 %v2362, %v2535
        %v2537 = vpop.f32.mrb[0].mxu0
        %v2538 = vadd.f32 %v2366, %v2537
        %v2539 = vpop.f32.mrb[0].mxu0
        %v2540 = vadd.f32 %v2362, %v2539
        %v2541 = vpop.f32.mrb[0].mxu0
        %v2542 = vadd.f32 %v2366, %v2541
        %2543 = vdwg.mxu0
        %2544 = vst [vmem:[%s245] sm:$0xff] %v2536
        %2545 = vst.msk [vmem:[%s245 + $0x8] sm:$0xff] %vm652, %v2538
        %2546 = vst [vmem:[%s245 + $0x10] sm:$0xff] %v2540
        %2547 = vst.msk [vmem:[%s245 + $0x18] sm:$0xff] %vm652, %v2542
        %s2548 = sand.u32 %s119, 1
        %s2549 = scalar_lea.sflag [#allocation6], %s2548
        %s2550 = sand.u32 %s119, 1
        %s2551 = smul.addr %s2550, 32
        %s2552 = scalar_lea.vmem [#allocation10], %s2551
        // Predicated region
        $region49: #{tpu_custom_call.1} parent=35 // pred_check
          %p2553 = pneg %p129
        $region50: #{tpu_custom_call.1} parent=35 // pred_check_branch
          %2555 = sbr.rel (%p2553) target = $region52
        $region51: #{tpu_custom_call.1} parent=35 // pred_region
          %s2556 = smul.u32 2, %s22
          %s2558 = ssub.s32 512, 512
          %2559 = vsyncadd %s2549, %s2558
          %s2560 = smul.addr %s2556, 2
          %s2561 = smul.addr %s2560, 128
          %s2562 = scalar_lea.hbm %s4, %s2561
          %s2563 = sshll.u32 %s2552, 4
          %s2564 = int_to_ptr.vmem [resolvable:$true] %s2563
          %2569 = dma.vmem_to_hbm [thread:$0]  %s2564, 512, %s2562, %s2549, 256, 256, 16
        $region52: #{tpu_custom_call.1} parent=35 // pred_fallthru
          _
      $region36: #{tpu_custom_call.1} parent=5 // pred_fallthru
        _
      %p2570 = scmp.le.s32.totalorder 2, %s17
      // Predicated region
      $region53: #{tpu_custom_call.1} parent=5 // pred_check
        %p2571 = pneg %p2570
      $region54: #{tpu_custom_call.1} parent=5 // pred_check_branch
        %2573 = sbr.rel (%p2571) target = $region56
      $region55: #{tpu_custom_call.1} parent=5 // pred_region
        %s2574 = ssub.s32 %s17, 2
        // Predicated region
        $region57: #{tpu_custom_call.1} parent=55 // pred_check
          %p2575 = pneg %p135
        $region58: #{tpu_custom_call.1} parent=55 // pred_check_branch
          %2577 = sbr.rel (%p2575) target = $region60
        $region59: #{tpu_custom_call.1} parent=55 // pred_region
          %s2578 = sand.u32 %s120, 1
          %s2579 = scalar_lea.sflag [#allocation6], %s2578
          %s2580 = sand.u32 %s120, 1
          %s2581 = smul.addr %s2580, 32
          %s2582 = scalar_lea.vmem [#allocation10], %s2581
          %2583 = dma.done %s2579, 512
        $region60: #{tpu_custom_call.1} parent=55 // pred_fallthru
          _
      $region56: #{tpu_custom_call.1} parent=5 // pred_fallthru
        _
    $region6: #{tpu_custom_call.1} parent=1 // loop_footer
      %s21 = sadd.s32 1, %s17
    $region7: #{tpu_custom_call.1} parent=1 // loop_footer_branch
      %16 = sbr.rel target = $region3
    $region8: #{tpu_custom_call.1} parent=1 // loop_exit
      _
    %2584 = vsyncpa [#allocation5], 1
    %s2585 = scalar_lea.sflag [#allocation5], 1
    %2586 = vsyncpa %s2585, 1
    %2587 = vsyncpa [#allocation8], 1
    %2588 = vsyncpa [#allocation6], 1
    %s2589 = scalar_lea.sflag [#allocation6], 1
    %2590 = vsyncpa %s2589, 1

</llo_original>
